<compile_context>
chip_gen: v7x
topology: tpu7x:2x2x1
jax: 0.10.0
libtpu: 0.0.40
codegen_flags: <defaults>
</compile_context>

<pallas_src>
import functools

import jax
import jax.numpy as jnp
from jax import lax
from jax.experimental import pallas as pl
from jax.experimental.pallas import tpu as pltpu


def _cdiv(a, b):
    return (a + b - 1) // b


def _round_up(n, m):
    return (n + m - 1) // m * m


def _vmem_capacity_bytes():
    # Generation-aware sizing: v7x has 64 MiB VMEM per TC, v5e/v6e have 128 MiB.
    try:
        return int(pltpu.get_tpu_info().vmem_capacity_bytes)
    except Exception:
        return 128 * 1024 * 1024


def _layernorm_kernel(x_ref, alpha_ref, bias_ref, o_ref, *, eps, hidden):
    # One logical row per physical row: plain cross-lane (XLU) reductions.
    x = x_ref[...].astype(jnp.float32)
    alpha = alpha_ref[0]
    bias = bias_ref[0]

    mean = jnp.mean(x, axis=-1, keepdims=True)
    diff = x - mean
    # torch.std is unbiased (ddof=1); hidden == 1 -> NaN, matching torch.
    inv_hm1 = (1.0 / (hidden - 1)) if hidden > 1 else float("nan")
    var = jnp.sum(diff * diff, axis=-1, keepdims=True) * inv_hm1
    inv = pl.reciprocal(jnp.sqrt(var) + eps, approx=False)            # (R, 1)
    o_ref[...] = (diff * (alpha * inv) + bias).astype(o_ref.dtype)


def _layernorm_kernel_packed(x_ref, sel_ref, selt_ref, alpha_ref, bias_ref,
                             o_ref, *, eps, hidden):
    # `pack` logical rows share one 128-lane physical row.  Segmented
    # reductions / broadcasts via constant 0/1 indicator matmuls on the MXU.
    # sel / sel_t are hoisted constant inputs (not rebuilt every grid step).
    x = x_ref[...].astype(jnp.float32)
    sel = sel_ref[...]        # (W, pack)
    sel_t = selt_ref[...]     # (pack, W)
    alpha = alpha_ref[0]
    bias = bias_ref[0]
    hp = lax.Precision.HIGHEST

    seg_sum = jnp.dot(x, sel, precision=hp,
                      preferred_element_type=jnp.float32)              # (R, pack)
    mean = seg_sum * (1.0 / hidden)
    mean_full = jnp.dot(mean, sel_t, precision=hp,
                        preferred_element_type=jnp.float32)            # (R, W)
    diff = x - mean_full
    seg_sq = jnp.dot(diff * diff, sel, precision=hp,
                     preferred_element_type=jnp.float32)               # (R, pack)
    inv_hm1 = (1.0 / (hidden - 1)) if hidden > 1 else float("nan")
    var = seg_sq * inv_hm1
    inv = pl.reciprocal(jnp.sqrt(var) + eps, approx=False)             # (R, pack)
    scale_full = jnp.dot(alpha * inv, sel_t, precision=hp,
                         preferred_element_type=jnp.float32)           # (R, W)
    o_ref[...] = (diff * scale_full + bias).astype(o_ref.dtype)


def layer_normalization(x, alpha, bias, *, eps=1e-6):
    """x: (B, S, H). alpha, bias: (1,) params (nn.Parameter(torch.ones/zeros(1)))."""
    B, S, H = x.shape
    M = B * S

    # Lane-dense packing for small H that divide 128, only when it needs no
    # padding (padding would cost a full extra HBM round-trip).
    pack = 1
    if H < 128 and 128 % H == 0:
        p = 128 // H
        if p > 1 and M % p == 0:
            pack = p
    # TODO(synk): extend lane-dense packing to H that don't divide 128 (48, 96, ...).
    W = pack * H
    rows = M // pack
    xp = x.reshape(rows, W)            # contiguous reshape: no copy, no pad

    # Generation-aware tile / VMEM budgets.
    vmem_cap = _vmem_capacity_bytes()
    if vmem_cap <= 64 * 1024 * 1024:                   # v7x-class (64 MiB VMEM)
        tile_budget, vmem_limit = 3 * 1024 * 1024, 44 * 1024 * 1024
    else:                                              # v5e / v6e (128 MiB VMEM)
        tile_budget, vmem_limit = 6 * 1024 * 1024, 64 * 1024 * 1024

    row_bytes = W * 4                                  # kernel temporaries are f32
    if rows <= 8:
        tile_rows = rows               # single block == full array shape (always legal)
    else:
        tile_rows = max(8, (tile_budget // row_bytes) // 8 * 8)
        # Keep >= ~8 grid steps so the BlockSpec double-buffer overlaps DMA
        # with compute (and megacore has work to shard).
        min_steps = 8
        if _cdiv(rows, tile_rows) < min_steps:
            tile_rows = max(8, _round_up(_cdiv(rows, min_steps), 8))
        # Best effort: even step count so v7x can split the parallel axis on 2 TCs.
        steps = _cdiv(rows, tile_rows)
        if steps > 1 and steps % 2 == 1:
            alt = max(8, _round_up(_cdiv(rows, steps + 1), 8))
            if _cdiv(rows, alt) % 2 == 0:
                tile_rows = alt

    grid = (_cdiv(rows, tile_rows),)   # ragged last block: Pallas clips OOB writes

    x_spec = pl.BlockSpec((tile_rows, W), lambda i: (i, 0))
    out_spec = pl.BlockSpec((tile_rows, W), lambda i: (i, 0))
    smem_spec = pl.BlockSpec(memory_space=pltpu.SMEM)

    if pack == 1:
        kernel = functools.partial(_layernorm_kernel, eps=eps, hidden=H)
        in_specs = [x_spec, smem_spec, smem_spec]
        args = (xp, alpha, bias)
    else:
        seg = jnp.arange(W, dtype=jnp.int32) // H
        sel = (seg[:, None] == jnp.arange(pack, dtype=jnp.int32)[None, :]
               ).astype(jnp.float32)                                   # (W, pack)
        sel_t = sel.T                                                  # (pack, W)
        kernel = functools.partial(_layernorm_kernel_packed, eps=eps, hidden=H)
        in_specs = [
            x_spec,
            pl.BlockSpec((W, pack), lambda i: (0, 0)),   # constant -> not re-DMA'd
            pl.BlockSpec((pack, W), lambda i: (0, 0)),
            smem_spec, smem_spec,
        ]
        args = (xp, sel, sel_t, alpha, bias)

    out = pl.pallas_call(
        kernel,
        out_shape=jax.ShapeDtypeStruct((rows, W), x.dtype),
        grid=grid,
        in_specs=in_specs,
        out_specs=out_spec,
        compiler_params=pltpu.CompilerParams(
            dimension_semantics=("parallel",),
            vmem_limit_bytes=vmem_limit,
        ),
    )(*args)

    return out.reshape(B, S, H)


if __name__ == "__main__":
    key = jax.random.PRNGKey(0)
    B, S, H = 2, 8, 32
    x = jax.random.normal(key, (B, S, H), dtype=jnp.float32)

    # Deterministic parameters matching nn.Parameter(torch.ones(1)) / zeros(1).
    alpha = jnp.ones((1,), dtype=jnp.float32)
    bias = jnp.zeros((1,), dtype=jnp.float32)
    eps = 1e-6

    out = jax.block_until_ready(layer_normalization(x, alpha, bias, eps=eps))

    # Pure-JAX reference (torch.std is unbiased: ddof=1; eps added to std).
    mean = jnp.mean(x, axis=-1, keepdims=True)
    std = jnp.std(x, axis=-1, keepdims=True, ddof=1)
    ref = alpha[0] * (x - mean) / (std + eps) + bias[0]

    assert out.shape == x.shape and out.dtype == x.dtype
    err = float(jnp.max(jnp.abs(out - ref)))
    assert jnp.allclose(out, ref, atol=1e-5, rtol=1e-5), f"max abs err {err}"
    print("KERNEL_OK")
</pallas_src>

<mosaic_0001>
module attributes {stable_mosaic.version = 11 : i64} {
  func.func @_layernorm_kernel_packed(%arg0: i32, %arg1: memref<4x128xf32, #tpu.memory_space<vmem>>, %arg2: memref<128x4xf32, #tpu.memory_space<vmem>>, %arg3: memref<4x128xf32, #tpu.memory_space<vmem>>, %arg4: memref<1xf32, #tpu.memory_space<smem>>, %arg5: memref<1xf32, #tpu.memory_space<smem>>, %arg6: memref<4x128xf32, #tpu.memory_space<vmem>>) attributes {dimension_semantics = [#tpu.dimension_semantics<parallel>], iteration_bounds = array<i64: 1>, scalar_prefetch = 0 : i64, scratch_operands = 0 : i64, tpu.core_type = #tpu.core_type<tc>, window_params = [{transform_indices = @transform_0, window_bounds = array<i64: 4, 128>}, {pipeline_mode = #tpu.pipeline_mode<synchronous>, transform_indices = @transform_1, window_bounds = array<i64: 128, 4>}, {pipeline_mode = #tpu.pipeline_mode<synchronous>, transform_indices = @transform_2, window_bounds = array<i64: 4, 128>}, {transform_indices = @transform_3, window_bounds = array<i64: 1>}, {transform_indices = @transform_4, window_bounds = array<i64: 1>}, {transform_indices = @transform_5, window_bounds = array<i64: 4, 128>}]} {
    %c0 = arith.constant 0 : index
    %c0_0 = arith.constant 0 : index
    %0 = vector.load %arg1[%c0, %c0_0] : memref<4x128xf32, #tpu.memory_space<vmem>>, vector<4x128xf32>
    %c0_1 = arith.constant 0 : index
    %c0_2 = arith.constant 0 : index
    %1 = vector.load %arg2[%c0_1, %c0_2] : memref<128x4xf32, #tpu.memory_space<vmem>>, vector<128x4xf32>
    %c0_3 = arith.constant 0 : index
    %c0_4 = arith.constant 0 : index
    %2 = vector.load %arg3[%c0_3, %c0_4] : memref<4x128xf32, #tpu.memory_space<vmem>>, vector<4x128xf32>
    %c0_5 = arith.constant 0 : index
    %3 = memref.load %arg4[%c0_5] : memref<1xf32, #tpu.memory_space<smem>>
    %c0_6 = arith.constant 0 : index
    %4 = memref.load %arg5[%c0_6] : memref<1xf32, #tpu.memory_space<smem>>
    %cst = arith.constant dense<0.000000e+00> : vector<4x4xf32>
    %5 = tpu.matmul %0, %1, %cst {dimension_numbers = #tpu.dot_dimension_numbers<[1], [0], [0], [1], [0, 0, 1, 1], [], []>, precision = #tpu.contract_precision<fp32>} : vector<4x128xf32>, vector<128x4xf32>, vector<4x4xf32> -> vector<4x4xf32>
    %cst_7 = arith.constant 3.125000e-02 : f32
    %6 = vector.broadcast %cst_7 : f32 to vector<4x4xf32>
    %7 = arith.mulf %5, %6 : vector<4x4xf32>
    %cst_8 = arith.constant dense<0.000000e+00> : vector<4x128xf32>
    %8 = tpu.matmul %7, %2, %cst_8 {dimension_numbers = #tpu.dot_dimension_numbers<[1], [0], [0], [1], [0, 0, 1, 1], [], []>, precision = #tpu.contract_precision<fp32>} : vector<4x4xf32>, vector<4x128xf32>, vector<4x128xf32> -> vector<4x128xf32>
    %9 = arith.subf %0, %8 : vector<4x128xf32>
    %10 = arith.mulf %9, %9 : vector<4x128xf32>
    %cst_9 = arith.constant dense<0.000000e+00> : vector<4x4xf32>
    %11 = tpu.matmul %10, %1, %cst_9 {dimension_numbers = #tpu.dot_dimension_numbers<[1], [0], [0], [1], [0, 0, 1, 1], [], []>, precision = #tpu.contract_precision<fp32>} : vector<4x128xf32>, vector<128x4xf32>, vector<4x4xf32> -> vector<4x4xf32>
    %cst_10 = arith.constant 0.0322580636 : f32
    %12 = vector.broadcast %cst_10 : f32 to vector<4x4xf32>
    %13 = arith.mulf %11, %12 : vector<4x4xf32>
    %14 = math.sqrt %13 : vector<4x4xf32>
    %cst_11 = arith.constant 9.99999997E-7 : f32
    %15 = vector.broadcast %cst_11 : f32 to vector<4x4xf32>
    %16 = arith.addf %14, %15 : vector<4x4xf32>
    %17 = tpu.reciprocal %16 : vector<4x4xf32> -> vector<4x4xf32>
    %18 = vector.broadcast %3 : f32 to vector<4x4xf32>
    %19 = arith.mulf %18, %17 : vector<4x4xf32>
    %cst_12 = arith.constant dense<0.000000e+00> : vector<4x128xf32>
    %20 = tpu.matmul %19, %2, %cst_12 {dimension_numbers = #tpu.dot_dimension_numbers<[1], [0], [0], [1], [0, 0, 1, 1], [], []>, precision = #tpu.contract_precision<fp32>} : vector<4x4xf32>, vector<4x128xf32>, vector<4x128xf32> -> vector<4x128xf32>
    %21 = arith.mulf %9, %20 : vector<4x128xf32>
    %22 = vector.broadcast %4 : f32 to vector<4x128xf32>
    %23 = arith.addf %21, %22 : vector<4x128xf32>
    %c0_13 = arith.constant 0 : index
    %c0_14 = arith.constant 0 : index
    %24 = vector.load %arg6[%c0_13, %c0_14] : memref<4x128xf32, #tpu.memory_space<vmem>>, vector<4x128xf32>
    tpu.vector_store %arg6[%c0_13, %c0_14], %23 {strides = array<i32>} : memref<4x128xf32, #tpu.memory_space<vmem>>, vector<4x128xf32>,
    return
  }
  func.func @transform_0(%arg0: i32) -> (i32, i32) {
    %c0_i32 = arith.constant 0 : i32
    %c0_i32_0 = arith.constant 0 : i32
    return %arg0, %c0_i32 : i32, i32
  }
  func.func @transform_1(%arg0: i32) -> (i32, i32) {
    %c0_i32 = arith.constant 0 : i32
    %c0_i32_0 = arith.constant 0 : i32
    %c0_i32_1 = arith.constant 0 : i32
    return %c0_i32, %c0_i32_0 : i32, i32
  }
  func.func @transform_2(%arg0: i32) -> (i32, i32) {
    %c0_i32 = arith.constant 0 : i32
    %c0_i32_0 = arith.constant 0 : i32
    %c0_i32_1 = arith.constant 0 : i32
    return %c0_i32, %c0_i32_0 : i32, i32
  }
  func.func @transform_3(%arg0: i32) -> i32 {
    %c0_i32 = arith.constant 0 : i32
    %c0_i32_0 = arith.constant 0 : i32
    return %c0_i32 : i32
  }
  func.func @transform_4(%arg0: i32) -> i32 {
    %c0_i32 = arith.constant 0 : i32
    %c0_i32_0 = arith.constant 0 : i32
    return %c0_i32 : i32
  }
  func.func @transform_5(%arg0: i32) -> (i32, i32) {
    %c0_i32 = arith.constant 0 : i32
    %c0_i32_0 = arith.constant 0 : i32
    return %arg0, %c0_i32 : i32, i32
  }
}

</mosaic_0001>

<llo_original>
// kernel: tpu_custom_call.1
$region0: #{tpu_custom_call.1}
  #allocation0 [shape = 'u32[]', space=smem, size = 0x4, offset = 0x4, fixed_abs, tag = 'smem constant byte address 0x4 - core index']
  #allocation1 [shape = 'u32[144,128]{1,0:T(1,128)}', space=vmem, size = 0x12000, scoped, tag = 'internal scratch']
  #allocation2 [shape = 'f32[1]{0:T(128)S(6)}', space=smem, size = 0x200, scoped, tag = 'scoped memory for tpu_custom_call.1']
  #allocation3 [shape = 'f32[1]{0:T(128)S(6)}', space=smem, size = 0x200, scoped, tag = 'scoped memory for tpu_custom_call.1']
  %s0 = inlined_call_operand.hbm [shape: f32[4,128], index: 0, kind: input, shape index: {}]
  %s1 = inlined_call_operand.hbm [shape: f32[128,4], index: 1, kind: input, shape index: {}]
  %s2 = inlined_call_operand.hbm [shape: f32[4,128], index: 2, kind: input, shape index: {}]
  %s3 = inlined_call_operand.<no memory space> [shape: f32[1], index: 3, kind: input, shape index: {}]
  %s4 = inlined_call_operand.<no memory space> [shape: f32[1], index: 4, kind: input, shape index: {}]
  %s5 = inlined_call_operand.hbm [shape: f32[4,128], index: 5, kind: output, shape index: {}]
  %s6 = sld [smem:[#allocation0]]
  $region42: #{tpu_custom_call.1} parent=0
    _
  %s8 = ssub.s32 1, %s6
  %s9 = scalar_select 0, %s8, %s6
  %10 = sst [smem:[#allocation2]] %s3
  %11 = sst [smem:[#allocation3]] %s4
  $region1: #{tpu_custom_call.1} parent=0
    #allocation4 [shape = 'u8[2048]{0}', space=vmem, size = 0x800, scoped, tag = 'input window, operand 0, single buffered']
    #allocation5 [shape = 's32[1]{0}', space=sflag, size = 0x4, scoped, tag = 'scoped memory for tpu_custom_call.1']
    #allocation6 [shape = 's32[1]{0}', space=sflag, size = 0x4, scoped, tag = 'scoped memory for tpu_custom_call.1']
    #allocation7 [shape = 'u8[65536]{0}', space=vmem, size = 0x10000, scoped, tag = 'input window, operand 1, single buffered']
    #allocation8 [shape = 's32[1]{0}', space=sflag, size = 0x4, scoped, tag = 'scoped memory for tpu_custom_call.1']
    #allocation9 [shape = 'u8[2048]{0}', space=vmem, size = 0x800, scoped, tag = 'input window, operand 2, single buffered']
    #allocation10 [shape = 'u8[2048]{0}', space=vmem, size = 0x800, scoped, tag = 'output window, operand 0, single buffered']
    %12 = vsyncpa [#allocation5], 0
    %13 = vsyncpa [#allocation8], 0
    %14 = vsyncpa [#allocation6], 0
    // Predicated region
    $region2: #{tpu_custom_call.1} parent=1 // pred_check
      _
    $region3: #{tpu_custom_call.1} parent=1 // pred_check_branch
      %16 = sbr.rel (0) target = $region5
    $region4: #{tpu_custom_call.1} parent=1 // pred_region
      %s18 = ssub.s32 64, 64
      %19 = vsyncadd [#allocation5], %s18
      %s21 = sshll.u32 [#allocation4], 4
      %s22 = int_to_ptr.vmem [resolvable:$true] %s21
      %24 = dma.hbm_to_vmem [thread:$0]  %s0, 64, %s22, [#allocation5]
    $region5: #{tpu_custom_call.1} parent=1 // pred_fallthru
      _
    // Predicated region
    $region6: #{tpu_custom_call.1} parent=1 // pred_check
      _
    $region7: #{tpu_custom_call.1} parent=1 // pred_check_branch
      %26 = sbr.rel (0) target = $region9
    $region8: #{tpu_custom_call.1} parent=1 // pred_region
      %s28 = ssub.s32 2048, 2048
      %29 = vsyncadd [#allocation8], %s28
      %s30 = sshll.u32 [#allocation7], 4
      %s31 = int_to_ptr.vmem [resolvable:$true] %s30
      %36 = dma.hbm_to_vmem [thread:$0]  %s1, 2048, %s31, [#allocation8], 128, 128, 8
    $region9: #{tpu_custom_call.1} parent=1 // pred_fallthru
      _
    // Predicated region
    $region10: #{tpu_custom_call.1} parent=1 // pred_check
      _
    $region11: #{tpu_custom_call.1} parent=1 // pred_check_branch
      %38 = sbr.rel (0) target = $region13
    $region12: #{tpu_custom_call.1} parent=1 // pred_region
      %s40 = ssub.s32 64, 64
      %41 = vsyncadd [#allocation8], %s40
      %s43 = sshll.u32 [#allocation9], 4
      %s44 = int_to_ptr.vmem [resolvable:$true] %s43
      %46 = dma.hbm_to_vmem [thread:$0]  %s2, 64, %s44, [#allocation8]
    $region13: #{tpu_custom_call.1} parent=1 // pred_fallthru
      _
    // Predicated region
    $region14: #{tpu_custom_call.1} parent=1 // pred_check
      _
    $region15: #{tpu_custom_call.1} parent=1 // pred_check_branch
      %48 = sbr.rel (0) target = $region17
    $region16: #{tpu_custom_call.1} parent=1 // pred_region
      _
    $region17: #{tpu_custom_call.1} parent=1 // pred_fallthru
      _
    // Predicated region
    $region18: #{tpu_custom_call.1} parent=1 // pred_check
      _
    $region19: #{tpu_custom_call.1} parent=1 // pred_check_branch
      %50 = sbr.rel (0) target = $region21
    $region20: #{tpu_custom_call.1} parent=1 // pred_region
      _
    $region21: #{tpu_custom_call.1} parent=1 // pred_fallthru
      _
    // Predicated region
    $region22: #{tpu_custom_call.1} parent=1 // pred_check
      _
    $region23: #{tpu_custom_call.1} parent=1 // pred_check_branch
      %52 = sbr.rel (0) target = $region25
    $region24: #{tpu_custom_call.1} parent=1 // pred_region
      %53 = dma.done [#allocation5], 64
    $region25: #{tpu_custom_call.1} parent=1 // pred_fallthru
      _
    // Predicated region
    $region26: #{tpu_custom_call.1} parent=1 // pred_check
      _
    $region27: #{tpu_custom_call.1} parent=1 // pred_check_branch
      %55 = sbr.rel (0) target = $region29
    $region28: #{tpu_custom_call.1} parent=1 // pred_region
      %56 = dma.done [#allocation8], 2048
    $region29: #{tpu_custom_call.1} parent=1 // pred_fallthru
      _
    // Predicated region
    $region30: #{tpu_custom_call.1} parent=1 // pred_check
      _
    $region31: #{tpu_custom_call.1} parent=1 // pred_check_branch
      %58 = sbr.rel (0) target = $region33
    $region32: #{tpu_custom_call.1} parent=1 // pred_region
      %59 = dma.done [#allocation8], 64
    $region33: #{tpu_custom_call.1} parent=1 // pred_fallthru
      _
    %v60 = vld [vmem:[#allocation4] sm:$0xf]
    %v61 = vld [vmem:[#allocation7] sm:$0xff]
    %v62 = vld [vmem:[#allocation7 + $0x8] sm:$0xff]
    %v63 = vld [vmem:[#allocation7 + $0x10] sm:$0xff]
    %v64 = vld [vmem:[#allocation7 + $0x18] sm:$0xff]
    %v65 = vld [vmem:[#allocation7 + $0x20] sm:$0xff]
    %v66 = vld [vmem:[#allocation7 + $0x28] sm:$0xff]
    %v67 = vld [vmem:[#allocation7 + $0x30] sm:$0xff]
    %v68 = vld [vmem:[#allocation7 + $0x38] sm:$0xff]
    %v69 = vld [vmem:[#allocation7 + $0x40] sm:$0xff]
    %v70 = vld [vmem:[#allocation7 + $0x48] sm:$0xff]
    %v71 = vld [vmem:[#allocation7 + $0x50] sm:$0xff]
    %v72 = vld [vmem:[#allocation7 + $0x58] sm:$0xff]
    %v73 = vld [vmem:[#allocation7 + $0x60] sm:$0xff]
    %v74 = vld [vmem:[#allocation7 + $0x68] sm:$0xff]
    %v75 = vld [vmem:[#allocation7 + $0x70] sm:$0xff]
    %v76 = vld [vmem:[#allocation7 + $0x78] sm:$0xff]
    %v77 = vld [vmem:[#allocation9] sm:$0xf]
    %s78 = sld [smem:[#allocation2]]
    %s79 = sld [smem:[#allocation3]]
    %80 = vmatprep.subr.mxu0 0.0
    %v81 = vand.u32 %v61, 4294901760
    %82 = vmatpush1.msra.mxu0 %v81
    %83 = vmatprep.subr.mxu0 0.0
    %v84 = vand.u32 %v62, 4294901760
    %85 = vmatpush1.msra.mxu0 %v84
    %86 = vmatprep.subr.mxu0 0.0
    %v87 = vand.u32 %v63, 4294901760
    %88 = vmatpush1.msra.mxu0 %v87
    %89 = vmatprep.subr.mxu0 0.0
    %v90 = vand.u32 %v64, 4294901760
    %91 = vmatpush1.msra.mxu0 %v90
    %92 = vmatprep.subr.mxu0 0.0
    %v93 = vand.u32 %v65, 4294901760
    %94 = vmatpush1.msra.mxu0 %v93
    %95 = vmatprep.subr.mxu0 0.0
    %v96 = vand.u32 %v66, 4294901760
    %97 = vmatpush1.msra.mxu0 %v96
    %98 = vmatprep.subr.mxu0 0.0
    %v99 = vand.u32 %v67, 4294901760
    %100 = vmatpush1.msra.mxu0 %v99
    %101 = vmatprep.subr.mxu0 0.0
    %v102 = vand.u32 %v68, 4294901760
    %103 = vmatpush1.msra.mxu0 %v102
    %104 = vmatprep.subr.mxu0 0.0
    %v105 = vand.u32 %v69, 4294901760
    %106 = vmatpush1.msra.mxu0 %v105
    %107 = vmatprep.subr.mxu0 0.0
    %v108 = vand.u32 %v70, 4294901760
    %109 = vmatpush1.msra.mxu0 %v108
    %110 = vmatprep.subr.mxu0 0.0
    %v111 = vand.u32 %v71, 4294901760
    %112 = vmatpush1.msra.mxu0 %v111
    %113 = vmatprep.subr.mxu0 0.0
    %v114 = vand.u32 %v72, 4294901760
    %115 = vmatpush1.msra.mxu0 %v114
    %116 = vmatprep.subr.mxu0 0.0
    %v117 = vand.u32 %v73, 4294901760
    %118 = vmatpush1.msra.mxu0 %v117
    %119 = vmatprep.subr.mxu0 0.0
    %v120 = vand.u32 %v74, 4294901760
    %121 = vmatpush1.msra.mxu0 %v120
    %122 = vmatprep.subr.mxu0 0.0
    %v123 = vand.u32 %v75, 4294901760
    %124 = vmatpush1.msra.mxu0 %v123
    %125 = vmatprep.subr.mxu0 0.0
    %v126 = vand.u32 %v76, 4294901760
    %127 = vmatpush1.msra.mxu0 %v126
    %128 = vmatprep.subr.mxu0 0.0
    %129 = vmatpush1.msra.mxu0 0.0
    %130 = vmatprep.subr.mxu0 0.0
    %131 = vmatpush1.msra.mxu0 0.0
    %132 = vmatprep.subr.mxu0 0.0
    %133 = vmatpush1.msra.mxu0 0.0
    %134 = vmatprep.subr.mxu0 0.0
    %135 = vmatpush1.msra.mxu0 0.0
    %136 = vmatprep.subr.mxu0 0.0
    %137 = vmatpush1.msra.mxu0 0.0
    %138 = vmatprep.subr.mxu0 0.0
    %139 = vmatpush1.msra.mxu0 0.0
    %140 = vmatprep.subr.mxu0 0.0
    %141 = vmatpush1.msra.mxu0 0.0
    %142 = vmatprep.subr.mxu0 0.0
    %143 = vmatpush1.msra.mxu0 0.0
    %144 = vmatprep.subr.mxu0 0.0
    %145 = vmatpush1.msra.mxu0 0.0
    %146 = vmatprep.subr.mxu0 0.0
    %147 = vmatpush1.msra.mxu0 0.0
    %148 = vmatprep.subr.mxu0 0.0
    %149 = vmatpush1.msra.mxu0 0.0
    %150 = vmatprep.subr.mxu0 0.0
    %151 = vmatpush1.msra.mxu0 0.0
    %152 = vmatprep.subr.mxu0 0.0
    %153 = vmatpush1.msra.mxu0 0.0
    %154 = vmatprep.subr.mxu0 0.0
    %155 = vmatpush1.msra.mxu0 0.0
    %156 = vmatprep.subr.mxu0 0.0
    %157 = vmatpush1.msra.mxu0 0.0
    %158 = vmatprep.subr.mxu0 0.0
    %159 = vmatpush1.msra.mxu0 0.0
    %160 = vmatprep.mubr.f32.mxu0 0.0
    %v161 = vand.u32 %v60, 4294901760
    %v162 = vsub.f32 %v60, %v161
    %v163 = vand.u32 %v162, 4294901760
    %v164 = vsub.f32 %v162, %v163
    %v165 = vand.u32 %v164, 4294901760
    %166 = vmatmul.mubr.f32.gmra.mrb[0].mxu0 %v165
    %v167 = vpop.f32.mrb[0].mxu0
    %v168 = vadd.f32 0.0, %v167
    %v169 = vpop.f32.mrb[0].mxu0
    %170 = vdwg.mxu0
    %171 = vmatprep.subr.mxu0 0.0
    %v172 = vand.u32 %v61, 4294901760
    %v173 = vsub.f32 %v61, %v172
    %v174 = vand.u32 %v173, 4294901760
    %v175 = vsub.f32 %v173, %v174
    %v176 = vand.u32 %v175, 4294901760
    %177 = vmatpush1.msra.mxu0 %v176
    %178 = vmatprep.subr.mxu0 0.0
    %v179 = vand.u32 %v62, 4294901760
    %v180 = vsub.f32 %v62, %v179
    %v181 = vand.u32 %v180, 4294901760
    %v182 = vsub.f32 %v180, %v181
    %v183 = vand.u32 %v182, 4294901760
    %184 = vmatpush1.msra.mxu0 %v183
    %185 = vmatprep.subr.mxu0 0.0
    %v186 = vand.u32 %v63, 4294901760
    %v187 = vsub.f32 %v63, %v186
    %v188 = vand.u32 %v187, 4294901760
    %v189 = vsub.f32 %v187, %v188
    %v190 = vand.u32 %v189, 4294901760
    %191 = vmatpush1.msra.mxu0 %v190
    %192 = vmatprep.subr.mxu0 0.0
    %v193 = vand.u32 %v64, 4294901760
    %v194 = vsub.f32 %v64, %v193
    %v195 = vand.u32 %v194, 4294901760
    %v196 = vsub.f32 %v194, %v195
    %v197 = vand.u32 %v196, 4294901760
    %198 = vmatpush1.msra.mxu0 %v197
    %199 = vmatprep.subr.mxu0 0.0
    %v200 = vand.u32 %v65, 4294901760
    %v201 = vsub.f32 %v65, %v200
    %v202 = vand.u32 %v201, 4294901760
    %v203 = vsub.f32 %v201, %v202
    %v204 = vand.u32 %v203, 4294901760
    %205 = vmatpush1.msra.mxu0 %v204
    %206 = vmatprep.subr.mxu0 0.0
    %v207 = vand.u32 %v66, 4294901760
    %v208 = vsub.f32 %v66, %v207
    %v209 = vand.u32 %v208, 4294901760
    %v210 = vsub.f32 %v208, %v209
    %v211 = vand.u32 %v210, 4294901760
    %212 = vmatpush1.msra.mxu0 %v211
    %213 = vmatprep.subr.mxu0 0.0
    %v214 = vand.u32 %v67, 4294901760
    %v215 = vsub.f32 %v67, %v214
    %v216 = vand.u32 %v215, 4294901760
    %v217 = vsub.f32 %v215, %v216
    %v218 = vand.u32 %v217, 4294901760
    %219 = vmatpush1.msra.mxu0 %v218
    %220 = vmatprep.subr.mxu0 0.0
    %v221 = vand.u32 %v68, 4294901760
    %v222 = vsub.f32 %v68, %v221
    %v223 = vand.u32 %v222, 4294901760
    %v224 = vsub.f32 %v222, %v223
    %v225 = vand.u32 %v224, 4294901760
    %226 = vmatpush1.msra.mxu0 %v225
    %227 = vmatprep.subr.mxu0 0.0
    %v228 = vand.u32 %v69, 4294901760
    %v229 = vsub.f32 %v69, %v228
    %v230 = vand.u32 %v229, 4294901760
    %v231 = vsub.f32 %v229, %v230
    %v232 = vand.u32 %v231, 4294901760
    %233 = vmatpush1.msra.mxu0 %v232
    %234 = vmatprep.subr.mxu0 0.0
    %v235 = vand.u32 %v70, 4294901760
    %v236 = vsub.f32 %v70, %v235
    %v237 = vand.u32 %v236, 4294901760
    %v238 = vsub.f32 %v236, %v237
    %v239 = vand.u32 %v238, 4294901760
    %240 = vmatpush1.msra.mxu0 %v239
    %241 = vmatprep.subr.mxu0 0.0
    %v242 = vand.u32 %v71, 4294901760
    %v243 = vsub.f32 %v71, %v242
    %v244 = vand.u32 %v243, 4294901760
    %v245 = vsub.f32 %v243, %v244
    %v246 = vand.u32 %v245, 4294901760
    %247 = vmatpush1.msra.mxu0 %v246
    %248 = vmatprep.subr.mxu0 0.0
    %v249 = vand.u32 %v72, 4294901760
    %v250 = vsub.f32 %v72, %v249
    %v251 = vand.u32 %v250, 4294901760
    %v252 = vsub.f32 %v250, %v251
    %v253 = vand.u32 %v252, 4294901760
    %254 = vmatpush1.msra.mxu0 %v253
    %255 = vmatprep.subr.mxu0 0.0
    %v256 = vand.u32 %v73, 4294901760
    %v257 = vsub.f32 %v73, %v256
    %v258 = vand.u32 %v257, 4294901760
    %v259 = vsub.f32 %v257, %v258
    %v260 = vand.u32 %v259, 4294901760
    %261 = vmatpush1.msra.mxu0 %v260
    %262 = vmatprep.subr.mxu0 0.0
    %v263 = vand.u32 %v74, 4294901760
    %v264 = vsub.f32 %v74, %v263
    %v265 = vand.u32 %v264, 4294901760
    %v266 = vsub.f32 %v264, %v265
    %v267 = vand.u32 %v266, 4294901760
    %268 = vmatpush1.msra.mxu0 %v267
    %269 = vmatprep.subr.mxu0 0.0
    %v270 = vand.u32 %v75, 4294901760
    %v271 = vsub.f32 %v75, %v270
    %v272 = vand.u32 %v271, 4294901760
    %v273 = vsub.f32 %v271, %v272
    %v274 = vand.u32 %v273, 4294901760
    %275 = vmatpush1.msra.mxu0 %v274
    %276 = vmatprep.subr.mxu0 0.0
    %v277 = vand.u32 %v76, 4294901760
    %v278 = vsub.f32 %v76, %v277
    %v279 = vand.u32 %v278, 4294901760
    %v280 = vsub.f32 %v278, %v279
    %v281 = vand.u32 %v280, 4294901760
    %282 = vmatpush1.msra.mxu0 %v281
    %283 = vmatprep.subr.mxu0 0.0
    %284 = vmatpush1.msra.mxu0 0.0
    %285 = vmatprep.subr.mxu0 0.0
    %286 = vmatpush1.msra.mxu0 0.0
    %287 = vmatprep.subr.mxu0 0.0
    %288 = vmatpush1.msra.mxu0 0.0
    %289 = vmatprep.subr.mxu0 0.0
    %290 = vmatpush1.msra.mxu0 0.0
    %291 = vmatprep.subr.mxu0 0.0
    %292 = vmatpush1.msra.mxu0 0.0
    %293 = vmatprep.subr.mxu0 0.0
    %294 = vmatpush1.msra.mxu0 0.0
    %295 = vmatprep.subr.mxu0 0.0
    %296 = vmatpush1.msra.mxu0 0.0
    %297 = vmatprep.subr.mxu0 0.0
    %298 = vmatpush1.msra.mxu0 0.0
    %299 = vmatprep.subr.mxu0 0.0
    %300 = vmatpush1.msra.mxu0 0.0
    %301 = vmatprep.subr.mxu0 0.0
    %302 = vmatpush1.msra.mxu0 0.0
    %303 = vmatprep.subr.mxu0 0.0
    %304 = vmatpush1.msra.mxu0 0.0
    %305 = vmatprep.subr.mxu0 0.0
    %306 = vmatpush1.msra.mxu0 0.0
    %307 = vmatprep.subr.mxu0 0.0
    %308 = vmatpush1.msra.mxu0 0.0
    %309 = vmatprep.subr.mxu0 0.0
    %310 = vmatpush1.msra.mxu0 0.0
    %311 = vmatprep.subr.mxu0 0.0
    %312 = vmatpush1.msra.mxu0 0.0
    %313 = vmatprep.subr.mxu0 0.0
    %314 = vmatpush1.msra.mxu0 0.0
    %315 = vmatprep.mubr.f32.mxu0 0.0
    %v316 = vand.u32 %v60, 4294901760
    %317 = vmatmul.mubr.f32.gmra.mrb[0].mxu0 %v316
    %v318 = vpop.f32.mrb[0].mxu0
    %v319 = vadd.f32 %v168, %v318
    %v320 = vpop.f32.mrb[0].mxu0
    %321 = vdwg.mxu0
    %322 = vmatprep.subr.mxu0 0.0
    %v323 = vand.u32 %v61, 4294901760
    %v324 = vsub.f32 %v61, %v323
    %325 = vmatpush1.msra.mxu0 %v324
    %326 = vmatprep.subr.mxu0 0.0
    %v327 = vand.u32 %v62, 4294901760
    %v328 = vsub.f32 %v62, %v327
    %329 = vmatpush1.msra.mxu0 %v328
    %330 = vmatprep.subr.mxu0 0.0
    %v331 = vand.u32 %v63, 4294901760
    %v332 = vsub.f32 %v63, %v331
    %333 = vmatpush1.msra.mxu0 %v332
    %334 = vmatprep.subr.mxu0 0.0
    %v335 = vand.u32 %v64, 4294901760
    %v336 = vsub.f32 %v64, %v335
    %337 = vmatpush1.msra.mxu0 %v336
    %338 = vmatprep.subr.mxu0 0.0
    %v339 = vand.u32 %v65, 4294901760
    %v340 = vsub.f32 %v65, %v339
    %341 = vmatpush1.msra.mxu0 %v340
    %342 = vmatprep.subr.mxu0 0.0
    %v343 = vand.u32 %v66, 4294901760
    %v344 = vsub.f32 %v66, %v343
    %345 = vmatpush1.msra.mxu0 %v344
    %346 = vmatprep.subr.mxu0 0.0
    %v347 = vand.u32 %v67, 4294901760
    %v348 = vsub.f32 %v67, %v347
    %349 = vmatpush1.msra.mxu0 %v348
    %350 = vmatprep.subr.mxu0 0.0
    %v351 = vand.u32 %v68, 4294901760
    %v352 = vsub.f32 %v68, %v351
    %353 = vmatpush1.msra.mxu0 %v352
    %354 = vmatprep.subr.mxu0 0.0
    %v355 = vand.u32 %v69, 4294901760
    %v356 = vsub.f32 %v69, %v355
    %357 = vmatpush1.msra.mxu0 %v356
    %358 = vmatprep.subr.mxu0 0.0
    %v359 = vand.u32 %v70, 4294901760
    %v360 = vsub.f32 %v70, %v359
    %361 = vmatpush1.msra.mxu0 %v360
    %362 = vmatprep.subr.mxu0 0.0
    %v363 = vand.u32 %v71, 4294901760
    %v364 = vsub.f32 %v71, %v363
    %365 = vmatpush1.msra.mxu0 %v364
    %366 = vmatprep.subr.mxu0 0.0
    %v367 = vand.u32 %v72, 4294901760
    %v368 = vsub.f32 %v72, %v367
    %369 = vmatpush1.msra.mxu0 %v368
    %370 = vmatprep.subr.mxu0 0.0
    %v371 = vand.u32 %v73, 4294901760
    %v372 = vsub.f32 %v73, %v371
    %373 = vmatpush1.msra.mxu0 %v372
    %374 = vmatprep.subr.mxu0 0.0
    %v375 = vand.u32 %v74, 4294901760
    %v376 = vsub.f32 %v74, %v375
    %377 = vmatpush1.msra.mxu0 %v376
    %378 = vmatprep.subr.mxu0 0.0
    %v379 = vand.u32 %v75, 4294901760
    %v380 = vsub.f32 %v75, %v379
    %381 = vmatpush1.msra.mxu0 %v380
    %382 = vmatprep.subr.mxu0 0.0
    %v383 = vand.u32 %v76, 4294901760
    %v384 = vsub.f32 %v76, %v383
    %385 = vmatpush1.msra.mxu0 %v384
    %386 = vmatprep.subr.mxu0 0.0
    %387 = vmatpush1.msra.mxu0 0.0
    %388 = vmatprep.subr.mxu0 0.0
    %389 = vmatpush1.msra.mxu0 0.0
    %390 = vmatprep.subr.mxu0 0.0
    %391 = vmatpush1.msra.mxu0 0.0
    %392 = vmatprep.subr.mxu0 0.0
    %393 = vmatpush1.msra.mxu0 0.0
    %394 = vmatprep.subr.mxu0 0.0
    %395 = vmatpush1.msra.mxu0 0.0
    %396 = vmatprep.subr.mxu0 0.0
    %397 = vmatpush1.msra.mxu0 0.0
    %398 = vmatprep.subr.mxu0 0.0
    %399 = vmatpush1.msra.mxu0 0.0
    %400 = vmatprep.subr.mxu0 0.0
    %401 = vmatpush1.msra.mxu0 0.0
    %402 = vmatprep.subr.mxu0 0.0
    %403 = vmatpush1.msra.mxu0 0.0
    %404 = vmatprep.subr.mxu0 0.0
    %405 = vmatpush1.msra.mxu0 0.0
    %406 = vmatprep.subr.mxu0 0.0
    %407 = vmatpush1.msra.mxu0 0.0
    %408 = vmatprep.subr.mxu0 0.0
    %409 = vmatpush1.msra.mxu0 0.0
    %410 = vmatprep.subr.mxu0 0.0
    %411 = vmatpush1.msra.mxu0 0.0
    %412 = vmatprep.subr.mxu0 0.0
    %413 = vmatpush1.msra.mxu0 0.0
    %414 = vmatprep.subr.mxu0 0.0
    %415 = vmatpush1.msra.mxu0 0.0
    %416 = vmatprep.subr.mxu0 0.0
    %417 = vmatpush1.msra.mxu0 0.0
    %418 = vmatprep.mubr.f32.mxu0 0.0
    %v419 = vand.u32 %v60, 4294901760
    %v420 = vsub.f32 %v60, %v419
    %421 = vmatmul.mubr.f32.gmra.mrb[0].mxu0 %v420
    %v422 = vpop.f32.mrb[0].mxu0
    %v423 = vadd.f32 %v319, %v422
    %v424 = vpop.f32.mrb[0].mxu0
    %425 = vdwg.mxu0
    %426 = vmatprep.subr.mxu0 0.0
    %v427 = vand.u32 %v61, 4294901760
    %428 = vmatpush1.msra.mxu0 %v427
    %429 = vmatprep.subr.mxu0 0.0
    %v430 = vand.u32 %v62, 4294901760
    %431 = vmatpush1.msra.mxu0 %v430
    %432 = vmatprep.subr.mxu0 0.0
    %v433 = vand.u32 %v63, 4294901760
    %434 = vmatpush1.msra.mxu0 %v433
    %435 = vmatprep.subr.mxu0 0.0
    %v436 = vand.u32 %v64, 4294901760
    %437 = vmatpush1.msra.mxu0 %v436
    %438 = vmatprep.subr.mxu0 0.0
    %v439 = vand.u32 %v65, 4294901760
    %440 = vmatpush1.msra.mxu0 %v439
    %441 = vmatprep.subr.mxu0 0.0
    %v442 = vand.u32 %v66, 4294901760
    %443 = vmatpush1.msra.mxu0 %v442
    %444 = vmatprep.subr.mxu0 0.0
    %v445 = vand.u32 %v67, 4294901760
    %446 = vmatpush1.msra.mxu0 %v445
    %447 = vmatprep.subr.mxu0 0.0
    %v448 = vand.u32 %v68, 4294901760
    %449 = vmatpush1.msra.mxu0 %v448
    %450 = vmatprep.subr.mxu0 0.0
    %v451 = vand.u32 %v69, 4294901760
    %452 = vmatpush1.msra.mxu0 %v451
    %453 = vmatprep.subr.mxu0 0.0
    %v454 = vand.u32 %v70, 4294901760
    %455 = vmatpush1.msra.mxu0 %v454
    %456 = vmatprep.subr.mxu0 0.0
    %v457 = vand.u32 %v71, 4294901760
    %458 = vmatpush1.msra.mxu0 %v457
    %459 = vmatprep.subr.mxu0 0.0
    %v460 = vand.u32 %v72, 4294901760
    %461 = vmatpush1.msra.mxu0 %v460
    %462 = vmatprep.subr.mxu0 0.0
    %v463 = vand.u32 %v73, 4294901760
    %464 = vmatpush1.msra.mxu0 %v463
    %465 = vmatprep.subr.mxu0 0.0
    %v466 = vand.u32 %v74, 4294901760
    %467 = vmatpush1.msra.mxu0 %v466
    %468 = vmatprep.subr.mxu0 0.0
    %v469 = vand.u32 %v75, 4294901760
    %470 = vmatpush1.msra.mxu0 %v469
    %471 = vmatprep.subr.mxu0 0.0
    %v472 = vand.u32 %v76, 4294901760
    %473 = vmatpush1.msra.mxu0 %v472
    %474 = vmatprep.subr.mxu0 0.0
    %475 = vmatpush1.msra.mxu0 0.0
    %476 = vmatprep.subr.mxu0 0.0
    %477 = vmatpush1.msra.mxu0 0.0
    %478 = vmatprep.subr.mxu0 0.0
    %479 = vmatpush1.msra.mxu0 0.0
    %480 = vmatprep.subr.mxu0 0.0
    %481 = vmatpush1.msra.mxu0 0.0
    %482 = vmatprep.subr.mxu0 0.0
    %483 = vmatpush1.msra.mxu0 0.0
    %484 = vmatprep.subr.mxu0 0.0
    %485 = vmatpush1.msra.mxu0 0.0
    %486 = vmatprep.subr.mxu0 0.0
    %487 = vmatpush1.msra.mxu0 0.0
    %488 = vmatprep.subr.mxu0 0.0
    %489 = vmatpush1.msra.mxu0 0.0
    %490 = vmatprep.subr.mxu0 0.0
    %491 = vmatpush1.msra.mxu0 0.0
    %492 = vmatprep.subr.mxu0 0.0
    %493 = vmatpush1.msra.mxu0 0.0
    %494 = vmatprep.subr.mxu0 0.0
    %495 = vmatpush1.msra.mxu0 0.0
    %496 = vmatprep.subr.mxu0 0.0
    %497 = vmatpush1.msra.mxu0 0.0
    %498 = vmatprep.subr.mxu0 0.0
    %499 = vmatpush1.msra.mxu0 0.0
    %500 = vmatprep.subr.mxu0 0.0
    %501 = vmatpush1.msra.mxu0 0.0
    %502 = vmatprep.subr.mxu0 0.0
    %503 = vmatpush1.msra.mxu0 0.0
    %504 = vmatprep.subr.mxu0 0.0
    %505 = vmatpush1.msra.mxu0 0.0
    %506 = vmatprep.mubr.f32.mxu0 0.0
    %v507 = vand.u32 %v60, 4294901760
    %v508 = vsub.f32 %v60, %v507
    %v509 = vand.u32 %v508, 4294901760
    %510 = vmatmul.mubr.f32.gmra.mrb[0].mxu0 %v509
    %v511 = vpop.f32.mrb[0].mxu0
    %v512 = vadd.f32 %v423, %v511
    %v513 = vpop.f32.mrb[0].mxu0
    %514 = vdwg.mxu0
    %515 = vmatprep.subr.mxu0 0.0
    %v516 = vand.u32 %v61, 4294901760
    %v517 = vsub.f32 %v61, %v516
    %v518 = vand.u32 %v517, 4294901760
    %519 = vmatpush1.msra.mxu0 %v518
    %520 = vmatprep.subr.mxu0 0.0
    %v521 = vand.u32 %v62, 4294901760
    %v522 = vsub.f32 %v62, %v521
    %v523 = vand.u32 %v522, 4294901760
    %524 = vmatpush1.msra.mxu0 %v523
    %525 = vmatprep.subr.mxu0 0.0
    %v526 = vand.u32 %v63, 4294901760
    %v527 = vsub.f32 %v63, %v526
    %v528 = vand.u32 %v527, 4294901760
    %529 = vmatpush1.msra.mxu0 %v528
    %530 = vmatprep.subr.mxu0 0.0
    %v531 = vand.u32 %v64, 4294901760
    %v532 = vsub.f32 %v64, %v531
    %v533 = vand.u32 %v532, 4294901760
    %534 = vmatpush1.msra.mxu0 %v533
    %535 = vmatprep.subr.mxu0 0.0
    %v536 = vand.u32 %v65, 4294901760
    %v537 = vsub.f32 %v65, %v536
    %v538 = vand.u32 %v537, 4294901760
    %539 = vmatpush1.msra.mxu0 %v538
    %540 = vmatprep.subr.mxu0 0.0
    %v541 = vand.u32 %v66, 4294901760
    %v542 = vsub.f32 %v66, %v541
    %v543 = vand.u32 %v542, 4294901760
    %544 = vmatpush1.msra.mxu0 %v543
    %545 = vmatprep.subr.mxu0 0.0
    %v546 = vand.u32 %v67, 4294901760
    %v547 = vsub.f32 %v67, %v546
    %v548 = vand.u32 %v547, 4294901760
    %549 = vmatpush1.msra.mxu0 %v548
    %550 = vmatprep.subr.mxu0 0.0
    %v551 = vand.u32 %v68, 4294901760
    %v552 = vsub.f32 %v68, %v551
    %v553 = vand.u32 %v552, 4294901760
    %554 = vmatpush1.msra.mxu0 %v553
    %555 = vmatprep.subr.mxu0 0.0
    %v556 = vand.u32 %v69, 4294901760
    %v557 = vsub.f32 %v69, %v556
    %v558 = vand.u32 %v557, 4294901760
    %559 = vmatpush1.msra.mxu0 %v558
    %560 = vmatprep.subr.mxu0 0.0
    %v561 = vand.u32 %v70, 4294901760
    %v562 = vsub.f32 %v70, %v561
    %v563 = vand.u32 %v562, 4294901760
    %564 = vmatpush1.msra.mxu0 %v563
    %565 = vmatprep.subr.mxu0 0.0
    %v566 = vand.u32 %v71, 4294901760
    %v567 = vsub.f32 %v71, %v566
    %v568 = vand.u32 %v567, 4294901760
    %569 = vmatpush1.msra.mxu0 %v568
    %570 = vmatprep.subr.mxu0 0.0
    %v571 = vand.u32 %v72, 4294901760
    %v572 = vsub.f32 %v72, %v571
    %v573 = vand.u32 %v572, 4294901760
    %574 = vmatpush1.msra.mxu0 %v573
    %575 = vmatprep.subr.mxu0 0.0
    %v576 = vand.u32 %v73, 4294901760
    %v577 = vsub.f32 %v73, %v576
    %v578 = vand.u32 %v577, 4294901760
    %579 = vmatpush1.msra.mxu0 %v578
    %580 = vmatprep.subr.mxu0 0.0
    %v581 = vand.u32 %v74, 4294901760
    %v582 = vsub.f32 %v74, %v581
    %v583 = vand.u32 %v582, 4294901760
    %584 = vmatpush1.msra.mxu0 %v583
    %585 = vmatprep.subr.mxu0 0.0
    %v586 = vand.u32 %v75, 4294901760
    %v587 = vsub.f32 %v75, %v586
    %v588 = vand.u32 %v587, 4294901760
    %589 = vmatpush1.msra.mxu0 %v588
    %590 = vmatprep.subr.mxu0 0.0
    %v591 = vand.u32 %v76, 4294901760
    %v592 = vsub.f32 %v76, %v591
    %v593 = vand.u32 %v592, 4294901760
    %594 = vmatpush1.msra.mxu0 %v593
    %595 = vmatprep.subr.mxu0 0.0
    %596 = vmatpush1.msra.mxu0 0.0
    %597 = vmatprep.subr.mxu0 0.0
    %598 = vmatpush1.msra.mxu0 0.0
    %599 = vmatprep.subr.mxu0 0.0
    %600 = vmatpush1.msra.mxu0 0.0
    %601 = vmatprep.subr.mxu0 0.0
    %602 = vmatpush1.msra.mxu0 0.0
    %603 = vmatprep.subr.mxu0 0.0
    %604 = vmatpush1.msra.mxu0 0.0
    %605 = vmatprep.subr.mxu0 0.0
    %606 = vmatpush1.msra.mxu0 0.0
    %607 = vmatprep.subr.mxu0 0.0
    %608 = vmatpush1.msra.mxu0 0.0
    %609 = vmatprep.subr.mxu0 0.0
    %610 = vmatpush1.msra.mxu0 0.0
    %611 = vmatprep.subr.mxu0 0.0
    %612 = vmatpush1.msra.mxu0 0.0
    %613 = vmatprep.subr.mxu0 0.0
    %614 = vmatpush1.msra.mxu0 0.0
    %615 = vmatprep.subr.mxu0 0.0
    %616 = vmatpush1.msra.mxu0 0.0
    %617 = vmatprep.subr.mxu0 0.0
    %618 = vmatpush1.msra.mxu0 0.0
    %619 = vmatprep.subr.mxu0 0.0
    %620 = vmatpush1.msra.mxu0 0.0
    %621 = vmatprep.subr.mxu0 0.0
    %622 = vmatpush1.msra.mxu0 0.0
    %623 = vmatprep.subr.mxu0 0.0
    %624 = vmatpush1.msra.mxu0 0.0
    %625 = vmatprep.subr.mxu0 0.0
    %626 = vmatpush1.msra.mxu0 0.0
    %627 = vmatprep.mubr.f32.mxu0 0.0
    %v628 = vand.u32 %v60, 4294901760
    %629 = vmatmul.mubr.f32.gmra.mrb[0].mxu0 %v628
    %v630 = vpop.f32.mrb[0].mxu0
    %v631 = vadd.f32 %v512, %v630
    %v632 = vpop.f32.mrb[0].mxu0
    %633 = vdwg.mxu0
    %634 = vmatprep.subr.mxu0 0.0
    %v635 = vand.u32 %v61, 4294901760
    %636 = vmatpush1.msra.mxu0 %v635
    %637 = vmatprep.subr.mxu0 0.0
    %v638 = vand.u32 %v62, 4294901760
    %639 = vmatpush1.msra.mxu0 %v638
    %640 = vmatprep.subr.mxu0 0.0
    %v641 = vand.u32 %v63, 4294901760
    %642 = vmatpush1.msra.mxu0 %v641
    %643 = vmatprep.subr.mxu0 0.0
    %v644 = vand.u32 %v64, 4294901760
    %645 = vmatpush1.msra.mxu0 %v644
    %646 = vmatprep.subr.mxu0 0.0
    %v647 = vand.u32 %v65, 4294901760
    %648 = vmatpush1.msra.mxu0 %v647
    %649 = vmatprep.subr.mxu0 0.0
    %v650 = vand.u32 %v66, 4294901760
    %651 = vmatpush1.msra.mxu0 %v650
    %652 = vmatprep.subr.mxu0 0.0
    %v653 = vand.u32 %v67, 4294901760
    %654 = vmatpush1.msra.mxu0 %v653
    %655 = vmatprep.subr.mxu0 0.0
    %v656 = vand.u32 %v68, 4294901760
    %657 = vmatpush1.msra.mxu0 %v656
    %658 = vmatprep.subr.mxu0 0.0
    %v659 = vand.u32 %v69, 4294901760
    %660 = vmatpush1.msra.mxu0 %v659
    %661 = vmatprep.subr.mxu0 0.0
    %v662 = vand.u32 %v70, 4294901760
    %663 = vmatpush1.msra.mxu0 %v662
    %664 = vmatprep.subr.mxu0 0.0
    %v665 = vand.u32 %v71, 4294901760
    %666 = vmatpush1.msra.mxu0 %v665
    %667 = vmatprep.subr.mxu0 0.0
    %v668 = vand.u32 %v72, 4294901760
    %669 = vmatpush1.msra.mxu0 %v668
    %670 = vmatprep.subr.mxu0 0.0
    %v671 = vand.u32 %v73, 4294901760
    %672 = vmatpush1.msra.mxu0 %v671
    %673 = vmatprep.subr.mxu0 0.0
    %v674 = vand.u32 %v74, 4294901760
    %675 = vmatpush1.msra.mxu0 %v674
    %676 = vmatprep.subr.mxu0 0.0
    %v677 = vand.u32 %v75, 4294901760
    %678 = vmatpush1.msra.mxu0 %v677
    %679 = vmatprep.subr.mxu0 0.0
    %v680 = vand.u32 %v76, 4294901760
    %681 = vmatpush1.msra.mxu0 %v680
    %682 = vmatprep.subr.mxu0 0.0
    %683 = vmatpush1.msra.mxu0 0.0
    %684 = vmatprep.subr.mxu0 0.0
    %685 = vmatpush1.msra.mxu0 0.0
    %686 = vmatprep.subr.mxu0 0.0
    %687 = vmatpush1.msra.mxu0 0.0
    %688 = vmatprep.subr.mxu0 0.0
    %689 = vmatpush1.msra.mxu0 0.0
    %690 = vmatprep.subr.mxu0 0.0
    %691 = vmatpush1.msra.mxu0 0.0
    %692 = vmatprep.subr.mxu0 0.0
    %693 = vmatpush1.msra.mxu0 0.0
    %694 = vmatprep.subr.mxu0 0.0
    %695 = vmatpush1.msra.mxu0 0.0
    %696 = vmatprep.subr.mxu0 0.0
    %697 = vmatpush1.msra.mxu0 0.0
    %698 = vmatprep.subr.mxu0 0.0
    %699 = vmatpush1.msra.mxu0 0.0
    %700 = vmatprep.subr.mxu0 0.0
    %701 = vmatpush1.msra.mxu0 0.0
    %702 = vmatprep.subr.mxu0 0.0
    %703 = vmatpush1.msra.mxu0 0.0
    %704 = vmatprep.subr.mxu0 0.0
    %705 = vmatpush1.msra.mxu0 0.0
    %706 = vmatprep.subr.mxu0 0.0
    %707 = vmatpush1.msra.mxu0 0.0
    %708 = vmatprep.subr.mxu0 0.0
    %709 = vmatpush1.msra.mxu0 0.0
    %710 = vmatprep.subr.mxu0 0.0
    %711 = vmatpush1.msra.mxu0 0.0
    %712 = vmatprep.subr.mxu0 0.0
    %713 = vmatpush1.msra.mxu0 0.0
    %714 = vmatprep.mubr.f32.mxu0 0.0
    %v715 = vand.u32 %v60, 4294901760
    %716 = vmatmul.mubr.f32.gmra.mrb[0].mxu0 %v715
    %v717 = vpop.f32.mrb[0].mxu0
    %v718 = vadd.f32 %v631, %v717
    %v719 = vpop.f32.mrb[0].mxu0
    %720 = vdwg.mxu0
    %v721 = vmul.f32 %v718, 0.03125
    %vm722 = vcmask 31744
    %v724 = vsel %vm722, %v721, 0
    %vm726 = vcmask 1043456
    %v728 = vsel %vm726, %v77, 0
    %730 = vmatprep.subr.mxu0 0.0
    %v731 = vand.u32 %v728, 4294901760
    %732 = vmatpush1.msra.mxu0 %v731
    %733 = vmatprep.subr.mxu0 0.0
    %734 = vmatpush1.msra.mxu0 0.0
    %735 = vmatprep.subr.mxu0 0.0
    %736 = vmatpush1.msra.mxu0 0.0
    %737 = vmatprep.subr.mxu0 0.0
    %738 = vmatpush1.msra.mxu0 0.0
    %739 = vmatprep.subr.mxu0 0.0
    %740 = vmatpush1.msra.mxu0 0.0
    %741 = vmatprep.subr.mxu0 0.0
    %742 = vmatpush1.msra.mxu0 0.0
    %743 = vmatprep.subr.mxu0 0.0
    %744 = vmatpush1.msra.mxu0 0.0
    %745 = vmatprep.subr.mxu0 0.0
    %746 = vmatpush1.msra.mxu0 0.0
    %747 = vmatprep.subr.mxu0 0.0
    %748 = vmatpush1.msra.mxu0 0.0
    %749 = vmatprep.subr.mxu0 0.0
    %750 = vmatpush1.msra.mxu0 0.0
    %751 = vmatprep.subr.mxu0 0.0
    %752 = vmatpush1.msra.mxu0 0.0
    %753 = vmatprep.subr.mxu0 0.0
    %754 = vmatpush1.msra.mxu0 0.0
    %755 = vmatprep.subr.mxu0 0.0
    %756 = vmatpush1.msra.mxu0 0.0
    %757 = vmatprep.subr.mxu0 0.0
    %758 = vmatpush1.msra.mxu0 0.0
    %759 = vmatprep.subr.mxu0 0.0
    %760 = vmatpush1.msra.mxu0 0.0
    %761 = vmatprep.subr.mxu0 0.0
    %762 = vmatpush1.msra.mxu0 0.0
    %763 = vmatprep.subr.mxu0 0.0
    %764 = vmatpush1.msra.mxu0 0.0
    %765 = vmatprep.subr.mxu0 0.0
    %766 = vmatpush1.msra.mxu0 0.0
    %767 = vmatprep.subr.mxu0 0.0
    %768 = vmatpush1.msra.mxu0 0.0
    %769 = vmatprep.subr.mxu0 0.0
    %770 = vmatpush1.msra.mxu0 0.0
    %771 = vmatprep.subr.mxu0 0.0
    %772 = vmatpush1.msra.mxu0 0.0
    %773 = vmatprep.subr.mxu0 0.0
    %774 = vmatpush1.msra.mxu0 0.0
    %775 = vmatprep.subr.mxu0 0.0
    %776 = vmatpush1.msra.mxu0 0.0
    %777 = vmatprep.subr.mxu0 0.0
    %778 = vmatpush1.msra.mxu0 0.0
    %779 = vmatprep.subr.mxu0 0.0
    %780 = vmatpush1.msra.mxu0 0.0
    %781 = vmatprep.subr.mxu0 0.0
    %782 = vmatpush1.msra.mxu0 0.0
    %783 = vmatprep.subr.mxu0 0.0
    %784 = vmatpush1.msra.mxu0 0.0
    %785 = vmatprep.subr.mxu0 0.0
    %786 = vmatpush1.msra.mxu0 0.0
    %787 = vmatprep.subr.mxu0 0.0
    %788 = vmatpush1.msra.mxu0 0.0
    %789 = vmatprep.subr.mxu0 0.0
    %790 = vmatpush1.msra.mxu0 0.0
    %791 = vmatprep.subr.mxu0 0.0
    %792 = vmatpush1.msra.mxu0 0.0
    %793 = vmatprep.subr.mxu0 0.0
    %794 = vmatpush1.msra.mxu0 0.0
    %795 = vmatprep.mubr.f32.mxu0 0.0
    %v796 = vand.u32 %v724, 4294901760
    %v797 = vsub.f32 %v724, %v796
    %v798 = vand.u32 %v797, 4294901760
    %v799 = vsub.f32 %v797, %v798
    %v800 = vand.u32 %v799, 4294901760
    %801 = vmatmul.mubr.f32.gmra.mrb[0].mxu0 %v800
    %v802 = vpop.f32.mrb[0].mxu0
    %v803 = vadd.f32 0.0, %v802
    %v804 = vpop.f32.mrb[0].mxu0
    %805 = vdwg.mxu0
    %806 = vmatprep.subr.mxu0 0.0
    %v807 = vand.u32 %v728, 4294901760
    %v808 = vsub.f32 %v728, %v807
    %v809 = vand.u32 %v808, 4294901760
    %v810 = vsub.f32 %v808, %v809
    %v811 = vand.u32 %v810, 4294901760
    %812 = vmatpush1.msra.mxu0 %v811
    %813 = vmatprep.subr.mxu0 0.0
    %814 = vmatpush1.msra.mxu0 0.0
    %815 = vmatprep.subr.mxu0 0.0
    %816 = vmatpush1.msra.mxu0 0.0
    %817 = vmatprep.subr.mxu0 0.0
    %818 = vmatpush1.msra.mxu0 0.0
    %819 = vmatprep.subr.mxu0 0.0
    %820 = vmatpush1.msra.mxu0 0.0
    %821 = vmatprep.subr.mxu0 0.0
    %822 = vmatpush1.msra.mxu0 0.0
    %823 = vmatprep.subr.mxu0 0.0
    %824 = vmatpush1.msra.mxu0 0.0
    %825 = vmatprep.subr.mxu0 0.0
    %826 = vmatpush1.msra.mxu0 0.0
    %827 = vmatprep.subr.mxu0 0.0
    %828 = vmatpush1.msra.mxu0 0.0
    %829 = vmatprep.subr.mxu0 0.0
    %830 = vmatpush1.msra.mxu0 0.0
    %831 = vmatprep.subr.mxu0 0.0
    %832 = vmatpush1.msra.mxu0 0.0
    %833 = vmatprep.subr.mxu0 0.0
    %834 = vmatpush1.msra.mxu0 0.0
    %835 = vmatprep.subr.mxu0 0.0
    %836 = vmatpush1.msra.mxu0 0.0
    %837 = vmatprep.subr.mxu0 0.0
    %838 = vmatpush1.msra.mxu0 0.0
    %839 = vmatprep.subr.mxu0 0.0
    %840 = vmatpush1.msra.mxu0 0.0
    %841 = vmatprep.subr.mxu0 0.0
    %842 = vmatpush1.msra.mxu0 0.0
    %843 = vmatprep.subr.mxu0 0.0
    %844 = vmatpush1.msra.mxu0 0.0
    %845 = vmatprep.subr.mxu0 0.0
    %846 = vmatpush1.msra.mxu0 0.0
    %847 = vmatprep.subr.mxu0 0.0
    %848 = vmatpush1.msra.mxu0 0.0
    %849 = vmatprep.subr.mxu0 0.0
    %850 = vmatpush1.msra.mxu0 0.0
    %851 = vmatprep.subr.mxu0 0.0
    %852 = vmatpush1.msra.mxu0 0.0
    %853 = vmatprep.subr.mxu0 0.0
    %854 = vmatpush1.msra.mxu0 0.0
    %855 = vmatprep.subr.mxu0 0.0
    %856 = vmatpush1.msra.mxu0 0.0
    %857 = vmatprep.subr.mxu0 0.0
    %858 = vmatpush1.msra.mxu0 0.0
    %859 = vmatprep.subr.mxu0 0.0
    %860 = vmatpush1.msra.mxu0 0.0
    %861 = vmatprep.subr.mxu0 0.0
    %862 = vmatpush1.msra.mxu0 0.0
    %863 = vmatprep.subr.mxu0 0.0
    %864 = vmatpush1.msra.mxu0 0.0
    %865 = vmatprep.subr.mxu0 0.0
    %866 = vmatpush1.msra.mxu0 0.0
    %867 = vmatprep.subr.mxu0 0.0
    %868 = vmatpush1.msra.mxu0 0.0
    %869 = vmatprep.subr.mxu0 0.0
    %870 = vmatpush1.msra.mxu0 0.0
    %871 = vmatprep.subr.mxu0 0.0
    %872 = vmatpush1.msra.mxu0 0.0
    %873 = vmatprep.subr.mxu0 0.0
    %874 = vmatpush1.msra.mxu0 0.0
    %875 = vmatprep.mubr.f32.mxu0 0.0
    %v876 = vand.u32 %v724, 4294901760
    %877 = vmatmul.mubr.f32.gmra.mrb[0].mxu0 %v876
    %v878 = vpop.f32.mrb[0].mxu0
    %v879 = vadd.f32 %v803, %v878
    %v880 = vpop.f32.mrb[0].mxu0
    %881 = vdwg.mxu0
    %882 = vmatprep.subr.mxu0 0.0
    %v883 = vand.u32 %v728, 4294901760
    %v884 = vsub.f32 %v728, %v883
    %885 = vmatpush1.msra.mxu0 %v884
    %886 = vmatprep.subr.mxu0 0.0
    %887 = vmatpush1.msra.mxu0 0.0
    %888 = vmatprep.subr.mxu0 0.0
    %889 = vmatpush1.msra.mxu0 0.0
    %890 = vmatprep.subr.mxu0 0.0
    %891 = vmatpush1.msra.mxu0 0.0
    %892 = vmatprep.subr.mxu0 0.0
    %893 = vmatpush1.msra.mxu0 0.0
    %894 = vmatprep.subr.mxu0 0.0
    %895 = vmatpush1.msra.mxu0 0.0
    %896 = vmatprep.subr.mxu0 0.0
    %897 = vmatpush1.msra.mxu0 0.0
    %898 = vmatprep.subr.mxu0 0.0
    %899 = vmatpush1.msra.mxu0 0.0
    %900 = vmatprep.subr.mxu0 0.0
    %901 = vmatpush1.msra.mxu0 0.0
    %902 = vmatprep.subr.mxu0 0.0
    %903 = vmatpush1.msra.mxu0 0.0
    %904 = vmatprep.subr.mxu0 0.0
    %905 = vmatpush1.msra.mxu0 0.0
    %906 = vmatprep.subr.mxu0 0.0
    %907 = vmatpush1.msra.mxu0 0.0
    %908 = vmatprep.subr.mxu0 0.0
    %909 = vmatpush1.msra.mxu0 0.0
    %910 = vmatprep.subr.mxu0 0.0
    %911 = vmatpush1.msra.mxu0 0.0
    %912 = vmatprep.subr.mxu0 0.0
    %913 = vmatpush1.msra.mxu0 0.0
    %914 = vmatprep.subr.mxu0 0.0
    %915 = vmatpush1.msra.mxu0 0.0
    %916 = vmatprep.subr.mxu0 0.0
    %917 = vmatpush1.msra.mxu0 0.0
    %918 = vmatprep.subr.mxu0 0.0
    %919 = vmatpush1.msra.mxu0 0.0
    %920 = vmatprep.subr.mxu0 0.0
    %921 = vmatpush1.msra.mxu0 0.0
    %922 = vmatprep.subr.mxu0 0.0
    %923 = vmatpush1.msra.mxu0 0.0
    %924 = vmatprep.subr.mxu0 0.0
    %925 = vmatpush1.msra.mxu0 0.0
    %926 = vmatprep.subr.mxu0 0.0
    %927 = vmatpush1.msra.mxu0 0.0
    %928 = vmatprep.subr.mxu0 0.0
    %929 = vmatpush1.msra.mxu0 0.0
    %930 = vmatprep.subr.mxu0 0.0
    %931 = vmatpush1.msra.mxu0 0.0
    %932 = vmatprep.subr.mxu0 0.0
    %933 = vmatpush1.msra.mxu0 0.0
    %934 = vmatprep.subr.mxu0 0.0
    %935 = vmatpush1.msra.mxu0 0.0
    %936 = vmatprep.subr.mxu0 0.0
    %937 = vmatpush1.msra.mxu0 0.0
    %938 = vmatprep.subr.mxu0 0.0
    %939 = vmatpush1.msra.mxu0 0.0
    %940 = vmatprep.subr.mxu0 0.0
    %941 = vmatpush1.msra.mxu0 0.0
    %942 = vmatprep.subr.mxu0 0.0
    %943 = vmatpush1.msra.mxu0 0.0
    %944 = vmatprep.subr.mxu0 0.0
    %945 = vmatpush1.msra.mxu0 0.0
    %946 = vmatprep.subr.mxu0 0.0
    %947 = vmatpush1.msra.mxu0 0.0
    %948 = vmatprep.mubr.f32.mxu0 0.0
    %v949 = vand.u32 %v724, 4294901760
    %v950 = vsub.f32 %v724, %v949
    %951 = vmatmul.mubr.f32.gmra.mrb[0].mxu0 %v950
    %v952 = vpop.f32.mrb[0].mxu0
    %v953 = vadd.f32 %v879, %v952
    %v954 = vpop.f32.mrb[0].mxu0
    %955 = vdwg.mxu0
    %956 = vmatprep.subr.mxu0 0.0
    %v957 = vand.u32 %v728, 4294901760
    %958 = vmatpush1.msra.mxu0 %v957
    %959 = vmatprep.subr.mxu0 0.0
    %960 = vmatpush1.msra.mxu0 0.0
    %961 = vmatprep.subr.mxu0 0.0
    %962 = vmatpush1.msra.mxu0 0.0
    %963 = vmatprep.subr.mxu0 0.0
    %964 = vmatpush1.msra.mxu0 0.0
    %965 = vmatprep.subr.mxu0 0.0
    %966 = vmatpush1.msra.mxu0 0.0
    %967 = vmatprep.subr.mxu0 0.0
    %968 = vmatpush1.msra.mxu0 0.0
    %969 = vmatprep.subr.mxu0 0.0
    %970 = vmatpush1.msra.mxu0 0.0
    %971 = vmatprep.subr.mxu0 0.0
    %972 = vmatpush1.msra.mxu0 0.0
    %973 = vmatprep.subr.mxu0 0.0
    %974 = vmatpush1.msra.mxu0 0.0
    %975 = vmatprep.subr.mxu0 0.0
    %976 = vmatpush1.msra.mxu0 0.0
    %977 = vmatprep.subr.mxu0 0.0
    %978 = vmatpush1.msra.mxu0 0.0
    %979 = vmatprep.subr.mxu0 0.0
    %980 = vmatpush1.msra.mxu0 0.0
    %981 = vmatprep.subr.mxu0 0.0
    %982 = vmatpush1.msra.mxu0 0.0
    %983 = vmatprep.subr.mxu0 0.0
    %984 = vmatpush1.msra.mxu0 0.0
    %985 = vmatprep.subr.mxu0 0.0
    %986 = vmatpush1.msra.mxu0 0.0
    %987 = vmatprep.subr.mxu0 0.0
    %988 = vmatpush1.msra.mxu0 0.0
    %989 = vmatprep.subr.mxu0 0.0
    %990 = vmatpush1.msra.mxu0 0.0
    %991 = vmatprep.subr.mxu0 0.0
    %992 = vmatpush1.msra.mxu0 0.0
    %993 = vmatprep.subr.mxu0 0.0
    %994 = vmatpush1.msra.mxu0 0.0
    %995 = vmatprep.subr.mxu0 0.0
    %996 = vmatpush1.msra.mxu0 0.0
    %997 = vmatprep.subr.mxu0 0.0
    %998 = vmatpush1.msra.mxu0 0.0
    %999 = vmatprep.subr.mxu0 0.0
    %1000 = vmatpush1.msra.mxu0 0.0
    %1001 = vmatprep.subr.mxu0 0.0
    %1002 = vmatpush1.msra.mxu0 0.0
    %1003 = vmatprep.subr.mxu0 0.0
    %1004 = vmatpush1.msra.mxu0 0.0
    %1005 = vmatprep.subr.mxu0 0.0
    %1006 = vmatpush1.msra.mxu0 0.0
    %1007 = vmatprep.subr.mxu0 0.0
    %1008 = vmatpush1.msra.mxu0 0.0
    %1009 = vmatprep.subr.mxu0 0.0
    %1010 = vmatpush1.msra.mxu0 0.0
    %1011 = vmatprep.subr.mxu0 0.0
    %1012 = vmatpush1.msra.mxu0 0.0
    %1013 = vmatprep.subr.mxu0 0.0
    %1014 = vmatpush1.msra.mxu0 0.0
    %1015 = vmatprep.subr.mxu0 0.0
    %1016 = vmatpush1.msra.mxu0 0.0
    %1017 = vmatprep.subr.mxu0 0.0
    %1018 = vmatpush1.msra.mxu0 0.0
    %1019 = vmatprep.subr.mxu0 0.0
    %1020 = vmatpush1.msra.mxu0 0.0
    %1021 = vmatprep.mubr.f32.mxu0 0.0
    %v1022 = vand.u32 %v724, 4294901760
    %v1023 = vsub.f32 %v724, %v1022
    %v1024 = vand.u32 %v1023, 4294901760
    %1025 = vmatmul.mubr.f32.gmra.mrb[0].mxu0 %v1024
    %v1026 = vpop.f32.mrb[0].mxu0
    %v1027 = vadd.f32 %v953, %v1026
    %v1028 = vpop.f32.mrb[0].mxu0
    %1029 = vdwg.mxu0
    %1030 = vmatprep.subr.mxu0 0.0
    %v1031 = vand.u32 %v728, 4294901760
    %v1032 = vsub.f32 %v728, %v1031
    %v1033 = vand.u32 %v1032, 4294901760
    %1034 = vmatpush1.msra.mxu0 %v1033
    %1035 = vmatprep.subr.mxu0 0.0
    %1036 = vmatpush1.msra.mxu0 0.0
    %1037 = vmatprep.subr.mxu0 0.0
    %1038 = vmatpush1.msra.mxu0 0.0
    %1039 = vmatprep.subr.mxu0 0.0
    %1040 = vmatpush1.msra.mxu0 0.0
    %1041 = vmatprep.subr.mxu0 0.0
    %1042 = vmatpush1.msra.mxu0 0.0
    %1043 = vmatprep.subr.mxu0 0.0
    %1044 = vmatpush1.msra.mxu0 0.0
    %1045 = vmatprep.subr.mxu0 0.0
    %1046 = vmatpush1.msra.mxu0 0.0
    %1047 = vmatprep.subr.mxu0 0.0
    %1048 = vmatpush1.msra.mxu0 0.0
    %1049 = vmatprep.subr.mxu0 0.0
    %1050 = vmatpush1.msra.mxu0 0.0
    %1051 = vmatprep.subr.mxu0 0.0
    %1052 = vmatpush1.msra.mxu0 0.0
    %1053 = vmatprep.subr.mxu0 0.0
    %1054 = vmatpush1.msra.mxu0 0.0
    %1055 = vmatprep.subr.mxu0 0.0
    %1056 = vmatpush1.msra.mxu0 0.0
    %1057 = vmatprep.subr.mxu0 0.0
    %1058 = vmatpush1.msra.mxu0 0.0
    %1059 = vmatprep.subr.mxu0 0.0
    %1060 = vmatpush1.msra.mxu0 0.0
    %1061 = vmatprep.subr.mxu0 0.0
    %1062 = vmatpush1.msra.mxu0 0.0
    %1063 = vmatprep.subr.mxu0 0.0
    %1064 = vmatpush1.msra.mxu0 0.0
    %1065 = vmatprep.subr.mxu0 0.0
    %1066 = vmatpush1.msra.mxu0 0.0
    %1067 = vmatprep.subr.mxu0 0.0
    %1068 = vmatpush1.msra.mxu0 0.0
    %1069 = vmatprep.subr.mxu0 0.0
    %1070 = vmatpush1.msra.mxu0 0.0
    %1071 = vmatprep.subr.mxu0 0.0
    %1072 = vmatpush1.msra.mxu0 0.0
    %1073 = vmatprep.subr.mxu0 0.0
    %1074 = vmatpush1.msra.mxu0 0.0
    %1075 = vmatprep.subr.mxu0 0.0
    %1076 = vmatpush1.msra.mxu0 0.0
    %1077 = vmatprep.subr.mxu0 0.0
    %1078 = vmatpush1.msra.mxu0 0.0
    %1079 = vmatprep.subr.mxu0 0.0
    %1080 = vmatpush1.msra.mxu0 0.0
    %1081 = vmatprep.subr.mxu0 0.0
    %1082 = vmatpush1.msra.mxu0 0.0
    %1083 = vmatprep.subr.mxu0 0.0
    %1084 = vmatpush1.msra.mxu0 0.0
    %1085 = vmatprep.subr.mxu0 0.0
    %1086 = vmatpush1.msra.mxu0 0.0
    %1087 = vmatprep.subr.mxu0 0.0
    %1088 = vmatpush1.msra.mxu0 0.0
    %1089 = vmatprep.subr.mxu0 0.0
    %1090 = vmatpush1.msra.mxu0 0.0
    %1091 = vmatprep.subr.mxu0 0.0
    %1092 = vmatpush1.msra.mxu0 0.0
    %1093 = vmatprep.subr.mxu0 0.0
    %1094 = vmatpush1.msra.mxu0 0.0
    %1095 = vmatprep.subr.mxu0 0.0
    %1096 = vmatpush1.msra.mxu0 0.0
    %1097 = vmatprep.mubr.f32.mxu0 0.0
    %v1098 = vand.u32 %v724, 4294901760
    %1099 = vmatmul.mubr.f32.gmra.mrb[0].mxu0 %v1098
    %v1100 = vpop.f32.mrb[0].mxu0
    %v1101 = vadd.f32 %v1027, %v1100
    %v1102 = vpop.f32.mrb[0].mxu0
    %1103 = vdwg.mxu0
    %1104 = vmatprep.subr.mxu0 0.0
    %v1105 = vand.u32 %v728, 4294901760
    %1106 = vmatpush1.msra.mxu0 %v1105
    %1107 = vmatprep.subr.mxu0 0.0
    %1108 = vmatpush1.msra.mxu0 0.0
    %1109 = vmatprep.subr.mxu0 0.0
    %1110 = vmatpush1.msra.mxu0 0.0
    %1111 = vmatprep.subr.mxu0 0.0
    %1112 = vmatpush1.msra.mxu0 0.0
    %1113 = vmatprep.subr.mxu0 0.0
    %1114 = vmatpush1.msra.mxu0 0.0
    %1115 = vmatprep.subr.mxu0 0.0
    %1116 = vmatpush1.msra.mxu0 0.0
    %1117 = vmatprep.subr.mxu0 0.0
    %1118 = vmatpush1.msra.mxu0 0.0
    %1119 = vmatprep.subr.mxu0 0.0
    %1120 = vmatpush1.msra.mxu0 0.0
    %1121 = vmatprep.subr.mxu0 0.0
    %1122 = vmatpush1.msra.mxu0 0.0
    %1123 = vmatprep.subr.mxu0 0.0
    %1124 = vmatpush1.msra.mxu0 0.0
    %1125 = vmatprep.subr.mxu0 0.0
    %1126 = vmatpush1.msra.mxu0 0.0
    %1127 = vmatprep.subr.mxu0 0.0
    %1128 = vmatpush1.msra.mxu0 0.0
    %1129 = vmatprep.subr.mxu0 0.0
    %1130 = vmatpush1.msra.mxu0 0.0
    %1131 = vmatprep.subr.mxu0 0.0
    %1132 = vmatpush1.msra.mxu0 0.0
    %1133 = vmatprep.subr.mxu0 0.0
    %1134 = vmatpush1.msra.mxu0 0.0
    %1135 = vmatprep.subr.mxu0 0.0
    %1136 = vmatpush1.msra.mxu0 0.0
    %1137 = vmatprep.subr.mxu0 0.0
    %1138 = vmatpush1.msra.mxu0 0.0
    %1139 = vmatprep.subr.mxu0 0.0
    %1140 = vmatpush1.msra.mxu0 0.0
    %1141 = vmatprep.subr.mxu0 0.0
    %1142 = vmatpush1.msra.mxu0 0.0
    %1143 = vmatprep.subr.mxu0 0.0
    %1144 = vmatpush1.msra.mxu0 0.0
    %1145 = vmatprep.subr.mxu0 0.0
    %1146 = vmatpush1.msra.mxu0 0.0
    %1147 = vmatprep.subr.mxu0 0.0
    %1148 = vmatpush1.msra.mxu0 0.0
    %1149 = vmatprep.subr.mxu0 0.0
    %1150 = vmatpush1.msra.mxu0 0.0
    %1151 = vmatprep.subr.mxu0 0.0
    %1152 = vmatpush1.msra.mxu0 0.0
    %1153 = vmatprep.subr.mxu0 0.0
    %1154 = vmatpush1.msra.mxu0 0.0
    %1155 = vmatprep.subr.mxu0 0.0
    %1156 = vmatpush1.msra.mxu0 0.0
    %1157 = vmatprep.subr.mxu0 0.0
    %1158 = vmatpush1.msra.mxu0 0.0
    %1159 = vmatprep.subr.mxu0 0.0
    %1160 = vmatpush1.msra.mxu0 0.0
    %1161 = vmatprep.subr.mxu0 0.0
    %1162 = vmatpush1.msra.mxu0 0.0
    %1163 = vmatprep.subr.mxu0 0.0
    %1164 = vmatpush1.msra.mxu0 0.0
    %1165 = vmatprep.subr.mxu0 0.0
    %1166 = vmatpush1.msra.mxu0 0.0
    %1167 = vmatprep.subr.mxu0 0.0
    %1168 = vmatpush1.msra.mxu0 0.0
    %1169 = vmatprep.mubr.f32.mxu0 0.0
    %v1170 = vand.u32 %v724, 4294901760
    %1171 = vmatmul.mubr.f32.gmra.mrb[0].mxu0 %v1170
    %v1172 = vpop.f32.mrb[0].mxu0
    %v1173 = vadd.f32 %v1101, %v1172
    %v1174 = vpop.f32.mrb[0].mxu0
    %1175 = vdwg.mxu0
    %v1176 = vsub.f32 %v60, %v1173
    %v1177 = vmul.f32 %v1176, %v1176
    %1178 = vmatprep.subr.mxu0 0.0
    %v1179 = vand.u32 %v61, 4294901760
    %1180 = vmatpush1.msra.mxu0 %v1179
    %1181 = vmatprep.subr.mxu0 0.0
    %v1182 = vand.u32 %v62, 4294901760
    %1183 = vmatpush1.msra.mxu0 %v1182
    %1184 = vmatprep.subr.mxu0 0.0
    %v1185 = vand.u32 %v63, 4294901760
    %1186 = vmatpush1.msra.mxu0 %v1185
    %1187 = vmatprep.subr.mxu0 0.0
    %v1188 = vand.u32 %v64, 4294901760
    %1189 = vmatpush1.msra.mxu0 %v1188
    %1190 = vmatprep.subr.mxu0 0.0
    %v1191 = vand.u32 %v65, 4294901760
    %1192 = vmatpush1.msra.mxu0 %v1191
    %1193 = vmatprep.subr.mxu0 0.0
    %v1194 = vand.u32 %v66, 4294901760
    %1195 = vmatpush1.msra.mxu0 %v1194
    %1196 = vmatprep.subr.mxu0 0.0
    %v1197 = vand.u32 %v67, 4294901760
    %1198 = vmatpush1.msra.mxu0 %v1197
    %1199 = vmatprep.subr.mxu0 0.0
    %v1200 = vand.u32 %v68, 4294901760
    %1201 = vmatpush1.msra.mxu0 %v1200
    %1202 = vmatprep.subr.mxu0 0.0
    %v1203 = vand.u32 %v69, 4294901760
    %1204 = vmatpush1.msra.mxu0 %v1203
    %1205 = vmatprep.subr.mxu0 0.0
    %v1206 = vand.u32 %v70, 4294901760
    %1207 = vmatpush1.msra.mxu0 %v1206
    %1208 = vmatprep.subr.mxu0 0.0
    %v1209 = vand.u32 %v71, 4294901760
    %1210 = vmatpush1.msra.mxu0 %v1209
    %1211 = vmatprep.subr.mxu0 0.0
    %v1212 = vand.u32 %v72, 4294901760
    %1213 = vmatpush1.msra.mxu0 %v1212
    %1214 = vmatprep.subr.mxu0 0.0
    %v1215 = vand.u32 %v73, 4294901760
    %1216 = vmatpush1.msra.mxu0 %v1215
    %1217 = vmatprep.subr.mxu0 0.0
    %v1218 = vand.u32 %v74, 4294901760
    %1219 = vmatpush1.msra.mxu0 %v1218
    %1220 = vmatprep.subr.mxu0 0.0
    %v1221 = vand.u32 %v75, 4294901760
    %1222 = vmatpush1.msra.mxu0 %v1221
    %1223 = vmatprep.subr.mxu0 0.0
    %v1224 = vand.u32 %v76, 4294901760
    %1225 = vmatpush1.msra.mxu0 %v1224
    %1226 = vmatprep.subr.mxu0 0.0
    %1227 = vmatpush1.msra.mxu0 0.0
    %1228 = vmatprep.subr.mxu0 0.0
    %1229 = vmatpush1.msra.mxu0 0.0
    %1230 = vmatprep.subr.mxu0 0.0
    %1231 = vmatpush1.msra.mxu0 0.0
    %1232 = vmatprep.subr.mxu0 0.0
    %1233 = vmatpush1.msra.mxu0 0.0
    %1234 = vmatprep.subr.mxu0 0.0
    %1235 = vmatpush1.msra.mxu0 0.0
    %1236 = vmatprep.subr.mxu0 0.0
    %1237 = vmatpush1.msra.mxu0 0.0
    %1238 = vmatprep.subr.mxu0 0.0
    %1239 = vmatpush1.msra.mxu0 0.0
    %1240 = vmatprep.subr.mxu0 0.0
    %1241 = vmatpush1.msra.mxu0 0.0
    %1242 = vmatprep.subr.mxu0 0.0
    %1243 = vmatpush1.msra.mxu0 0.0
    %1244 = vmatprep.subr.mxu0 0.0
    %1245 = vmatpush1.msra.mxu0 0.0
    %1246 = vmatprep.subr.mxu0 0.0
    %1247 = vmatpush1.msra.mxu0 0.0
    %1248 = vmatprep.subr.mxu0 0.0
    %1249 = vmatpush1.msra.mxu0 0.0
    %1250 = vmatprep.subr.mxu0 0.0
    %1251 = vmatpush1.msra.mxu0 0.0
    %1252 = vmatprep.subr.mxu0 0.0
    %1253 = vmatpush1.msra.mxu0 0.0
    %1254 = vmatprep.subr.mxu0 0.0
    %1255 = vmatpush1.msra.mxu0 0.0
    %1256 = vmatprep.subr.mxu0 0.0
    %1257 = vmatpush1.msra.mxu0 0.0
    %1258 = vmatprep.mubr.f32.mxu0 0.0
    %v1259 = vand.u32 %v1177, 4294901760
    %v1260 = vsub.f32 %v1177, %v1259
    %v1261 = vand.u32 %v1260, 4294901760
    %v1262 = vsub.f32 %v1260, %v1261
    %v1263 = vand.u32 %v1262, 4294901760
    %1264 = vmatmul.mubr.f32.gmra.mrb[0].mxu0 %v1263
    %v1265 = vpop.f32.mrb[0].mxu0
    %v1266 = vadd.f32 0.0, %v1265
    %v1267 = vpop.f32.mrb[0].mxu0
    %1268 = vdwg.mxu0
    %1269 = vmatprep.subr.mxu0 0.0
    %v1270 = vand.u32 %v61, 4294901760
    %v1271 = vsub.f32 %v61, %v1270
    %v1272 = vand.u32 %v1271, 4294901760
    %v1273 = vsub.f32 %v1271, %v1272
    %v1274 = vand.u32 %v1273, 4294901760
    %1275 = vmatpush1.msra.mxu0 %v1274
    %1276 = vmatprep.subr.mxu0 0.0
    %v1277 = vand.u32 %v62, 4294901760
    %v1278 = vsub.f32 %v62, %v1277
    %v1279 = vand.u32 %v1278, 4294901760
    %v1280 = vsub.f32 %v1278, %v1279
    %v1281 = vand.u32 %v1280, 4294901760
    %1282 = vmatpush1.msra.mxu0 %v1281
    %1283 = vmatprep.subr.mxu0 0.0
    %v1284 = vand.u32 %v63, 4294901760
    %v1285 = vsub.f32 %v63, %v1284
    %v1286 = vand.u32 %v1285, 4294901760
    %v1287 = vsub.f32 %v1285, %v1286
    %v1288 = vand.u32 %v1287, 4294901760
    %1289 = vmatpush1.msra.mxu0 %v1288
    %1290 = vmatprep.subr.mxu0 0.0
    %v1291 = vand.u32 %v64, 4294901760
    %v1292 = vsub.f32 %v64, %v1291
    %v1293 = vand.u32 %v1292, 4294901760
    %v1294 = vsub.f32 %v1292, %v1293
    %v1295 = vand.u32 %v1294, 4294901760
    %1296 = vmatpush1.msra.mxu0 %v1295
    %1297 = vmatprep.subr.mxu0 0.0
    %v1298 = vand.u32 %v65, 4294901760
    %v1299 = vsub.f32 %v65, %v1298
    %v1300 = vand.u32 %v1299, 4294901760
    %v1301 = vsub.f32 %v1299, %v1300
    %v1302 = vand.u32 %v1301, 4294901760
    %1303 = vmatpush1.msra.mxu0 %v1302
    %1304 = vmatprep.subr.mxu0 0.0
    %v1305 = vand.u32 %v66, 4294901760
    %v1306 = vsub.f32 %v66, %v1305
    %v1307 = vand.u32 %v1306, 4294901760
    %v1308 = vsub.f32 %v1306, %v1307
    %v1309 = vand.u32 %v1308, 4294901760
    %1310 = vmatpush1.msra.mxu0 %v1309
    %1311 = vmatprep.subr.mxu0 0.0
    %v1312 = vand.u32 %v67, 4294901760
    %v1313 = vsub.f32 %v67, %v1312
    %v1314 = vand.u32 %v1313, 4294901760
    %v1315 = vsub.f32 %v1313, %v1314
    %v1316 = vand.u32 %v1315, 4294901760
    %1317 = vmatpush1.msra.mxu0 %v1316
    %1318 = vmatprep.subr.mxu0 0.0
    %v1319 = vand.u32 %v68, 4294901760
    %v1320 = vsub.f32 %v68, %v1319
    %v1321 = vand.u32 %v1320, 4294901760
    %v1322 = vsub.f32 %v1320, %v1321
    %v1323 = vand.u32 %v1322, 4294901760
    %1324 = vmatpush1.msra.mxu0 %v1323
    %1325 = vmatprep.subr.mxu0 0.0
    %v1326 = vand.u32 %v69, 4294901760
    %v1327 = vsub.f32 %v69, %v1326
    %v1328 = vand.u32 %v1327, 4294901760
    %v1329 = vsub.f32 %v1327, %v1328
    %v1330 = vand.u32 %v1329, 4294901760
    %1331 = vmatpush1.msra.mxu0 %v1330
    %1332 = vmatprep.subr.mxu0 0.0
    %v1333 = vand.u32 %v70, 4294901760
    %v1334 = vsub.f32 %v70, %v1333
    %v1335 = vand.u32 %v1334, 4294901760
    %v1336 = vsub.f32 %v1334, %v1335
    %v1337 = vand.u32 %v1336, 4294901760
    %1338 = vmatpush1.msra.mxu0 %v1337
    %1339 = vmatprep.subr.mxu0 0.0
    %v1340 = vand.u32 %v71, 4294901760
    %v1341 = vsub.f32 %v71, %v1340
    %v1342 = vand.u32 %v1341, 4294901760
    %v1343 = vsub.f32 %v1341, %v1342
    %v1344 = vand.u32 %v1343, 4294901760
    %1345 = vmatpush1.msra.mxu0 %v1344
    %1346 = vmatprep.subr.mxu0 0.0
    %v1347 = vand.u32 %v72, 4294901760
    %v1348 = vsub.f32 %v72, %v1347
    %v1349 = vand.u32 %v1348, 4294901760
    %v1350 = vsub.f32 %v1348, %v1349
    %v1351 = vand.u32 %v1350, 4294901760
    %1352 = vmatpush1.msra.mxu0 %v1351
    %1353 = vmatprep.subr.mxu0 0.0
    %v1354 = vand.u32 %v73, 4294901760
    %v1355 = vsub.f32 %v73, %v1354
    %v1356 = vand.u32 %v1355, 4294901760
    %v1357 = vsub.f32 %v1355, %v1356
    %v1358 = vand.u32 %v1357, 4294901760
    %1359 = vmatpush1.msra.mxu0 %v1358
    %1360 = vmatprep.subr.mxu0 0.0
    %v1361 = vand.u32 %v74, 4294901760
    %v1362 = vsub.f32 %v74, %v1361
    %v1363 = vand.u32 %v1362, 4294901760
    %v1364 = vsub.f32 %v1362, %v1363
    %v1365 = vand.u32 %v1364, 4294901760
    %1366 = vmatpush1.msra.mxu0 %v1365
    %1367 = vmatprep.subr.mxu0 0.0
    %v1368 = vand.u32 %v75, 4294901760
    %v1369 = vsub.f32 %v75, %v1368
    %v1370 = vand.u32 %v1369, 4294901760
    %v1371 = vsub.f32 %v1369, %v1370
    %v1372 = vand.u32 %v1371, 4294901760
    %1373 = vmatpush1.msra.mxu0 %v1372
    %1374 = vmatprep.subr.mxu0 0.0
    %v1375 = vand.u32 %v76, 4294901760
    %v1376 = vsub.f32 %v76, %v1375
    %v1377 = vand.u32 %v1376, 4294901760
    %v1378 = vsub.f32 %v1376, %v1377
    %v1379 = vand.u32 %v1378, 4294901760
    %1380 = vmatpush1.msra.mxu0 %v1379
    %1381 = vmatprep.subr.mxu0 0.0
    %1382 = vmatpush1.msra.mxu0 0.0
    %1383 = vmatprep.subr.mxu0 0.0
    %1384 = vmatpush1.msra.mxu0 0.0
    %1385 = vmatprep.subr.mxu0 0.0
    %1386 = vmatpush1.msra.mxu0 0.0
    %1387 = vmatprep.subr.mxu0 0.0
    %1388 = vmatpush1.msra.mxu0 0.0
    %1389 = vmatprep.subr.mxu0 0.0
    %1390 = vmatpush1.msra.mxu0 0.0
    %1391 = vmatprep.subr.mxu0 0.0
    %1392 = vmatpush1.msra.mxu0 0.0
    %1393 = vmatprep.subr.mxu0 0.0
    %1394 = vmatpush1.msra.mxu0 0.0
    %1395 = vmatprep.subr.mxu0 0.0
    %1396 = vmatpush1.msra.mxu0 0.0
    %1397 = vmatprep.subr.mxu0 0.0
    %1398 = vmatpush1.msra.mxu0 0.0
    %1399 = vmatprep.subr.mxu0 0.0
    %1400 = vmatpush1.msra.mxu0 0.0
    %1401 = vmatprep.subr.mxu0 0.0
    %1402 = vmatpush1.msra.mxu0 0.0
    %1403 = vmatprep.subr.mxu0 0.0
    %1404 = vmatpush1.msra.mxu0 0.0
    %1405 = vmatprep.subr.mxu0 0.0
    %1406 = vmatpush1.msra.mxu0 0.0
    %1407 = vmatprep.subr.mxu0 0.0
    %1408 = vmatpush1.msra.mxu0 0.0
    %1409 = vmatprep.subr.mxu0 0.0
    %1410 = vmatpush1.msra.mxu0 0.0
    %1411 = vmatprep.subr.mxu0 0.0
    %1412 = vmatpush1.msra.mxu0 0.0
    %1413 = vmatprep.mubr.f32.mxu0 0.0
    %v1414 = vand.u32 %v1177, 4294901760
    %1415 = vmatmul.mubr.f32.gmra.mrb[0].mxu0 %v1414
    %v1416 = vpop.f32.mrb[0].mxu0
    %v1417 = vadd.f32 %v1266, %v1416
    %v1418 = vpop.f32.mrb[0].mxu0
    %1419 = vdwg.mxu0
    %1420 = vmatprep.subr.mxu0 0.0
    %v1421 = vand.u32 %v61, 4294901760
    %v1422 = vsub.f32 %v61, %v1421
    %1423 = vmatpush1.msra.mxu0 %v1422
    %1424 = vmatprep.subr.mxu0 0.0
    %v1425 = vand.u32 %v62, 4294901760
    %v1426 = vsub.f32 %v62, %v1425
    %1427 = vmatpush1.msra.mxu0 %v1426
    %1428 = vmatprep.subr.mxu0 0.0
    %v1429 = vand.u32 %v63, 4294901760
    %v1430 = vsub.f32 %v63, %v1429
    %1431 = vmatpush1.msra.mxu0 %v1430
    %1432 = vmatprep.subr.mxu0 0.0
    %v1433 = vand.u32 %v64, 4294901760
    %v1434 = vsub.f32 %v64, %v1433
    %1435 = vmatpush1.msra.mxu0 %v1434
    %1436 = vmatprep.subr.mxu0 0.0
    %v1437 = vand.u32 %v65, 4294901760
    %v1438 = vsub.f32 %v65, %v1437
    %1439 = vmatpush1.msra.mxu0 %v1438
    %1440 = vmatprep.subr.mxu0 0.0
    %v1441 = vand.u32 %v66, 4294901760
    %v1442 = vsub.f32 %v66, %v1441
    %1443 = vmatpush1.msra.mxu0 %v1442
    %1444 = vmatprep.subr.mxu0 0.0
    %v1445 = vand.u32 %v67, 4294901760
    %v1446 = vsub.f32 %v67, %v1445
    %1447 = vmatpush1.msra.mxu0 %v1446
    %1448 = vmatprep.subr.mxu0 0.0
    %v1449 = vand.u32 %v68, 4294901760
    %v1450 = vsub.f32 %v68, %v1449
    %1451 = vmatpush1.msra.mxu0 %v1450
    %1452 = vmatprep.subr.mxu0 0.0
    %v1453 = vand.u32 %v69, 4294901760
    %v1454 = vsub.f32 %v69, %v1453
    %1455 = vmatpush1.msra.mxu0 %v1454
    %1456 = vmatprep.subr.mxu0 0.0
    %v1457 = vand.u32 %v70, 4294901760
    %v1458 = vsub.f32 %v70, %v1457
    %1459 = vmatpush1.msra.mxu0 %v1458
    %1460 = vmatprep.subr.mxu0 0.0
    %v1461 = vand.u32 %v71, 4294901760
    %v1462 = vsub.f32 %v71, %v1461
    %1463 = vmatpush1.msra.mxu0 %v1462
    %1464 = vmatprep.subr.mxu0 0.0
    %v1465 = vand.u32 %v72, 4294901760
    %v1466 = vsub.f32 %v72, %v1465
    %1467 = vmatpush1.msra.mxu0 %v1466
    %1468 = vmatprep.subr.mxu0 0.0
    %v1469 = vand.u32 %v73, 4294901760
    %v1470 = vsub.f32 %v73, %v1469
    %1471 = vmatpush1.msra.mxu0 %v1470
    %1472 = vmatprep.subr.mxu0 0.0
    %v1473 = vand.u32 %v74, 4294901760
    %v1474 = vsub.f32 %v74, %v1473
    %1475 = vmatpush1.msra.mxu0 %v1474
    %1476 = vmatprep.subr.mxu0 0.0
    %v1477 = vand.u32 %v75, 4294901760
    %v1478 = vsub.f32 %v75, %v1477
    %1479 = vmatpush1.msra.mxu0 %v1478
    %1480 = vmatprep.subr.mxu0 0.0
    %v1481 = vand.u32 %v76, 4294901760
    %v1482 = vsub.f32 %v76, %v1481
    %1483 = vmatpush1.msra.mxu0 %v1482
    %1484 = vmatprep.subr.mxu0 0.0
    %1485 = vmatpush1.msra.mxu0 0.0
    %1486 = vmatprep.subr.mxu0 0.0
    %1487 = vmatpush1.msra.mxu0 0.0
    %1488 = vmatprep.subr.mxu0 0.0
    %1489 = vmatpush1.msra.mxu0 0.0
    %1490 = vmatprep.subr.mxu0 0.0
    %1491 = vmatpush1.msra.mxu0 0.0
    %1492 = vmatprep.subr.mxu0 0.0
    %1493 = vmatpush1.msra.mxu0 0.0
    %1494 = vmatprep.subr.mxu0 0.0
    %1495 = vmatpush1.msra.mxu0 0.0
    %1496 = vmatprep.subr.mxu0 0.0
    %1497 = vmatpush1.msra.mxu0 0.0
    %1498 = vmatprep.subr.mxu0 0.0
    %1499 = vmatpush1.msra.mxu0 0.0
    %1500 = vmatprep.subr.mxu0 0.0
    %1501 = vmatpush1.msra.mxu0 0.0
    %1502 = vmatprep.subr.mxu0 0.0
    %1503 = vmatpush1.msra.mxu0 0.0
    %1504 = vmatprep.subr.mxu0 0.0
    %1505 = vmatpush1.msra.mxu0 0.0
    %1506 = vmatprep.subr.mxu0 0.0
    %1507 = vmatpush1.msra.mxu0 0.0
    %1508 = vmatprep.subr.mxu0 0.0
    %1509 = vmatpush1.msra.mxu0 0.0
    %1510 = vmatprep.subr.mxu0 0.0
    %1511 = vmatpush1.msra.mxu0 0.0
    %1512 = vmatprep.subr.mxu0 0.0
    %1513 = vmatpush1.msra.mxu0 0.0
    %1514 = vmatprep.subr.mxu0 0.0
    %1515 = vmatpush1.msra.mxu0 0.0
    %1516 = vmatprep.mubr.f32.mxu0 0.0
    %v1517 = vand.u32 %v1177, 4294901760
    %v1518 = vsub.f32 %v1177, %v1517
    %1519 = vmatmul.mubr.f32.gmra.mrb[0].mxu0 %v1518
    %v1520 = vpop.f32.mrb[0].mxu0
    %v1521 = vadd.f32 %v1417, %v1520
    %v1522 = vpop.f32.mrb[0].mxu0
    %1523 = vdwg.mxu0
    %1524 = vmatprep.subr.mxu0 0.0
    %v1525 = vand.u32 %v61, 4294901760
    %1526 = vmatpush1.msra.mxu0 %v1525
    %1527 = vmatprep.subr.mxu0 0.0
    %v1528 = vand.u32 %v62, 4294901760
    %1529 = vmatpush1.msra.mxu0 %v1528
    %1530 = vmatprep.subr.mxu0 0.0
    %v1531 = vand.u32 %v63, 4294901760
    %1532 = vmatpush1.msra.mxu0 %v1531
    %1533 = vmatprep.subr.mxu0 0.0
    %v1534 = vand.u32 %v64, 4294901760
    %1535 = vmatpush1.msra.mxu0 %v1534
    %1536 = vmatprep.subr.mxu0 0.0
    %v1537 = vand.u32 %v65, 4294901760
    %1538 = vmatpush1.msra.mxu0 %v1537
    %1539 = vmatprep.subr.mxu0 0.0
    %v1540 = vand.u32 %v66, 4294901760
    %1541 = vmatpush1.msra.mxu0 %v1540
    %1542 = vmatprep.subr.mxu0 0.0
    %v1543 = vand.u32 %v67, 4294901760
    %1544 = vmatpush1.msra.mxu0 %v1543
    %1545 = vmatprep.subr.mxu0 0.0
    %v1546 = vand.u32 %v68, 4294901760
    %1547 = vmatpush1.msra.mxu0 %v1546
    %1548 = vmatprep.subr.mxu0 0.0
    %v1549 = vand.u32 %v69, 4294901760
    %1550 = vmatpush1.msra.mxu0 %v1549
    %1551 = vmatprep.subr.mxu0 0.0
    %v1552 = vand.u32 %v70, 4294901760
    %1553 = vmatpush1.msra.mxu0 %v1552
    %1554 = vmatprep.subr.mxu0 0.0
    %v1555 = vand.u32 %v71, 4294901760
    %1556 = vmatpush1.msra.mxu0 %v1555
    %1557 = vmatprep.subr.mxu0 0.0
    %v1558 = vand.u32 %v72, 4294901760
    %1559 = vmatpush1.msra.mxu0 %v1558
    %1560 = vmatprep.subr.mxu0 0.0
    %v1561 = vand.u32 %v73, 4294901760
    %1562 = vmatpush1.msra.mxu0 %v1561
    %1563 = vmatprep.subr.mxu0 0.0
    %v1564 = vand.u32 %v74, 4294901760
    %1565 = vmatpush1.msra.mxu0 %v1564
    %1566 = vmatprep.subr.mxu0 0.0
    %v1567 = vand.u32 %v75, 4294901760
    %1568 = vmatpush1.msra.mxu0 %v1567
    %1569 = vmatprep.subr.mxu0 0.0
    %v1570 = vand.u32 %v76, 4294901760
    %1571 = vmatpush1.msra.mxu0 %v1570
    %1572 = vmatprep.subr.mxu0 0.0
    %1573 = vmatpush1.msra.mxu0 0.0
    %1574 = vmatprep.subr.mxu0 0.0
    %1575 = vmatpush1.msra.mxu0 0.0
    %1576 = vmatprep.subr.mxu0 0.0
    %1577 = vmatpush1.msra.mxu0 0.0
    %1578 = vmatprep.subr.mxu0 0.0
    %1579 = vmatpush1.msra.mxu0 0.0
    %1580 = vmatprep.subr.mxu0 0.0
    %1581 = vmatpush1.msra.mxu0 0.0
    %1582 = vmatprep.subr.mxu0 0.0
    %1583 = vmatpush1.msra.mxu0 0.0
    %1584 = vmatprep.subr.mxu0 0.0
    %1585 = vmatpush1.msra.mxu0 0.0
    %1586 = vmatprep.subr.mxu0 0.0
    %1587 = vmatpush1.msra.mxu0 0.0
    %1588 = vmatprep.subr.mxu0 0.0
    %1589 = vmatpush1.msra.mxu0 0.0
    %1590 = vmatprep.subr.mxu0 0.0
    %1591 = vmatpush1.msra.mxu0 0.0
    %1592 = vmatprep.subr.mxu0 0.0
    %1593 = vmatpush1.msra.mxu0 0.0
    %1594 = vmatprep.subr.mxu0 0.0
    %1595 = vmatpush1.msra.mxu0 0.0
    %1596 = vmatprep.subr.mxu0 0.0
    %1597 = vmatpush1.msra.mxu0 0.0
    %1598 = vmatprep.subr.mxu0 0.0
    %1599 = vmatpush1.msra.mxu0 0.0
    %1600 = vmatprep.subr.mxu0 0.0
    %1601 = vmatpush1.msra.mxu0 0.0
    %1602 = vmatprep.subr.mxu0 0.0
    %1603 = vmatpush1.msra.mxu0 0.0
    %1604 = vmatprep.mubr.f32.mxu0 0.0
    %v1605 = vand.u32 %v1177, 4294901760
    %v1606 = vsub.f32 %v1177, %v1605
    %v1607 = vand.u32 %v1606, 4294901760
    %1608 = vmatmul.mubr.f32.gmra.mrb[0].mxu0 %v1607
    %v1609 = vpop.f32.mrb[0].mxu0
    %v1610 = vadd.f32 %v1521, %v1609
    %v1611 = vpop.f32.mrb[0].mxu0
    %1612 = vdwg.mxu0
    %1613 = vmatprep.subr.mxu0 0.0
    %v1614 = vand.u32 %v61, 4294901760
    %v1615 = vsub.f32 %v61, %v1614
    %v1616 = vand.u32 %v1615, 4294901760
    %1617 = vmatpush1.msra.mxu0 %v1616
    %1618 = vmatprep.subr.mxu0 0.0
    %v1619 = vand.u32 %v62, 4294901760
    %v1620 = vsub.f32 %v62, %v1619
    %v1621 = vand.u32 %v1620, 4294901760
    %1622 = vmatpush1.msra.mxu0 %v1621
    %1623 = vmatprep.subr.mxu0 0.0
    %v1624 = vand.u32 %v63, 4294901760
    %v1625 = vsub.f32 %v63, %v1624
    %v1626 = vand.u32 %v1625, 4294901760
    %1627 = vmatpush1.msra.mxu0 %v1626
    %1628 = vmatprep.subr.mxu0 0.0
    %v1629 = vand.u32 %v64, 4294901760
    %v1630 = vsub.f32 %v64, %v1629
    %v1631 = vand.u32 %v1630, 4294901760
    %1632 = vmatpush1.msra.mxu0 %v1631
    %1633 = vmatprep.subr.mxu0 0.0
    %v1634 = vand.u32 %v65, 4294901760
    %v1635 = vsub.f32 %v65, %v1634
    %v1636 = vand.u32 %v1635, 4294901760
    %1637 = vmatpush1.msra.mxu0 %v1636
    %1638 = vmatprep.subr.mxu0 0.0
    %v1639 = vand.u32 %v66, 4294901760
    %v1640 = vsub.f32 %v66, %v1639
    %v1641 = vand.u32 %v1640, 4294901760
    %1642 = vmatpush1.msra.mxu0 %v1641
    %1643 = vmatprep.subr.mxu0 0.0
    %v1644 = vand.u32 %v67, 4294901760
    %v1645 = vsub.f32 %v67, %v1644
    %v1646 = vand.u32 %v1645, 4294901760
    %1647 = vmatpush1.msra.mxu0 %v1646
    %1648 = vmatprep.subr.mxu0 0.0
    %v1649 = vand.u32 %v68, 4294901760
    %v1650 = vsub.f32 %v68, %v1649
    %v1651 = vand.u32 %v1650, 4294901760
    %1652 = vmatpush1.msra.mxu0 %v1651
    %1653 = vmatprep.subr.mxu0 0.0
    %v1654 = vand.u32 %v69, 4294901760
    %v1655 = vsub.f32 %v69, %v1654
    %v1656 = vand.u32 %v1655, 4294901760
    %1657 = vmatpush1.msra.mxu0 %v1656
    %1658 = vmatprep.subr.mxu0 0.0
    %v1659 = vand.u32 %v70, 4294901760
    %v1660 = vsub.f32 %v70, %v1659
    %v1661 = vand.u32 %v1660, 4294901760
    %1662 = vmatpush1.msra.mxu0 %v1661
    %1663 = vmatprep.subr.mxu0 0.0
    %v1664 = vand.u32 %v71, 4294901760
    %v1665 = vsub.f32 %v71, %v1664
    %v1666 = vand.u32 %v1665, 4294901760
    %1667 = vmatpush1.msra.mxu0 %v1666
    %1668 = vmatprep.subr.mxu0 0.0
    %v1669 = vand.u32 %v72, 4294901760
    %v1670 = vsub.f32 %v72, %v1669
    %v1671 = vand.u32 %v1670, 4294901760
    %1672 = vmatpush1.msra.mxu0 %v1671
    %1673 = vmatprep.subr.mxu0 0.0
    %v1674 = vand.u32 %v73, 4294901760
    %v1675 = vsub.f32 %v73, %v1674
    %v1676 = vand.u32 %v1675, 4294901760
    %1677 = vmatpush1.msra.mxu0 %v1676
    %1678 = vmatprep.subr.mxu0 0.0
    %v1679 = vand.u32 %v74, 4294901760
    %v1680 = vsub.f32 %v74, %v1679
    %v1681 = vand.u32 %v1680, 4294901760
    %1682 = vmatpush1.msra.mxu0 %v1681
    %1683 = vmatprep.subr.mxu0 0.0
    %v1684 = vand.u32 %v75, 4294901760
    %v1685 = vsub.f32 %v75, %v1684
    %v1686 = vand.u32 %v1685, 4294901760
    %1687 = vmatpush1.msra.mxu0 %v1686
    %1688 = vmatprep.subr.mxu0 0.0
    %v1689 = vand.u32 %v76, 4294901760
    %v1690 = vsub.f32 %v76, %v1689
    %v1691 = vand.u32 %v1690, 4294901760
    %1692 = vmatpush1.msra.mxu0 %v1691
    %1693 = vmatprep.subr.mxu0 0.0
    %1694 = vmatpush1.msra.mxu0 0.0
    %1695 = vmatprep.subr.mxu0 0.0
    %1696 = vmatpush1.msra.mxu0 0.0
    %1697 = vmatprep.subr.mxu0 0.0
    %1698 = vmatpush1.msra.mxu0 0.0
    %1699 = vmatprep.subr.mxu0 0.0
    %1700 = vmatpush1.msra.mxu0 0.0
    %1701 = vmatprep.subr.mxu0 0.0
    %1702 = vmatpush1.msra.mxu0 0.0
    %1703 = vmatprep.subr.mxu0 0.0
    %1704 = vmatpush1.msra.mxu0 0.0
    %1705 = vmatprep.subr.mxu0 0.0
    %1706 = vmatpush1.msra.mxu0 0.0
    %1707 = vmatprep.subr.mxu0 0.0
    %1708 = vmatpush1.msra.mxu0 0.0
    %1709 = vmatprep.subr.mxu0 0.0
    %1710 = vmatpush1.msra.mxu0 0.0
    %1711 = vmatprep.subr.mxu0 0.0
    %1712 = vmatpush1.msra.mxu0 0.0
    %1713 = vmatprep.subr.mxu0 0.0
    %1714 = vmatpush1.msra.mxu0 0.0
    %1715 = vmatprep.subr.mxu0 0.0
    %1716 = vmatpush1.msra.mxu0 0.0
    %1717 = vmatprep.subr.mxu0 0.0
    %1718 = vmatpush1.msra.mxu0 0.0
    %1719 = vmatprep.subr.mxu0 0.0
    %1720 = vmatpush1.msra.mxu0 0.0
    %1721 = vmatprep.subr.mxu0 0.0
    %1722 = vmatpush1.msra.mxu0 0.0
    %1723 = vmatprep.subr.mxu0 0.0
    %1724 = vmatpush1.msra.mxu0 0.0
    %1725 = vmatprep.mubr.f32.mxu0 0.0
    %v1726 = vand.u32 %v1177, 4294901760
    %1727 = vmatmul.mubr.f32.gmra.mrb[0].mxu0 %v1726
    %v1728 = vpop.f32.mrb[0].mxu0
    %v1729 = vadd.f32 %v1610, %v1728
    %v1730 = vpop.f32.mrb[0].mxu0
    %1731 = vdwg.mxu0
    %1732 = vmatprep.subr.mxu0 0.0
    %v1733 = vand.u32 %v61, 4294901760
    %1734 = vmatpush1.msra.mxu0 %v1733
    %1735 = vmatprep.subr.mxu0 0.0
    %v1736 = vand.u32 %v62, 4294901760
    %1737 = vmatpush1.msra.mxu0 %v1736
    %1738 = vmatprep.subr.mxu0 0.0
    %v1739 = vand.u32 %v63, 4294901760
    %1740 = vmatpush1.msra.mxu0 %v1739
    %1741 = vmatprep.subr.mxu0 0.0
    %v1742 = vand.u32 %v64, 4294901760
    %1743 = vmatpush1.msra.mxu0 %v1742
    %1744 = vmatprep.subr.mxu0 0.0
    %v1745 = vand.u32 %v65, 4294901760
    %1746 = vmatpush1.msra.mxu0 %v1745
    %1747 = vmatprep.subr.mxu0 0.0
    %v1748 = vand.u32 %v66, 4294901760
    %1749 = vmatpush1.msra.mxu0 %v1748
    %1750 = vmatprep.subr.mxu0 0.0
    %v1751 = vand.u32 %v67, 4294901760
    %1752 = vmatpush1.msra.mxu0 %v1751
    %1753 = vmatprep.subr.mxu0 0.0
    %v1754 = vand.u32 %v68, 4294901760
    %1755 = vmatpush1.msra.mxu0 %v1754
    %1756 = vmatprep.subr.mxu0 0.0
    %v1757 = vand.u32 %v69, 4294901760
    %1758 = vmatpush1.msra.mxu0 %v1757
    %1759 = vmatprep.subr.mxu0 0.0
    %v1760 = vand.u32 %v70, 4294901760
    %1761 = vmatpush1.msra.mxu0 %v1760
    %1762 = vmatprep.subr.mxu0 0.0
    %v1763 = vand.u32 %v71, 4294901760
    %1764 = vmatpush1.msra.mxu0 %v1763
    %1765 = vmatprep.subr.mxu0 0.0
    %v1766 = vand.u32 %v72, 4294901760
    %1767 = vmatpush1.msra.mxu0 %v1766
    %1768 = vmatprep.subr.mxu0 0.0
    %v1769 = vand.u32 %v73, 4294901760
    %1770 = vmatpush1.msra.mxu0 %v1769
    %1771 = vmatprep.subr.mxu0 0.0
    %v1772 = vand.u32 %v74, 4294901760
    %1773 = vmatpush1.msra.mxu0 %v1772
    %1774 = vmatprep.subr.mxu0 0.0
    %v1775 = vand.u32 %v75, 4294901760
    %1776 = vmatpush1.msra.mxu0 %v1775
    %1777 = vmatprep.subr.mxu0 0.0
    %v1778 = vand.u32 %v76, 4294901760
    %1779 = vmatpush1.msra.mxu0 %v1778
    %1780 = vmatprep.subr.mxu0 0.0
    %1781 = vmatpush1.msra.mxu0 0.0
    %1782 = vmatprep.subr.mxu0 0.0
    %1783 = vmatpush1.msra.mxu0 0.0
    %1784 = vmatprep.subr.mxu0 0.0
    %1785 = vmatpush1.msra.mxu0 0.0
    %1786 = vmatprep.subr.mxu0 0.0
    %1787 = vmatpush1.msra.mxu0 0.0
    %1788 = vmatprep.subr.mxu0 0.0
    %1789 = vmatpush1.msra.mxu0 0.0
    %1790 = vmatprep.subr.mxu0 0.0
    %1791 = vmatpush1.msra.mxu0 0.0
    %1792 = vmatprep.subr.mxu0 0.0
    %1793 = vmatpush1.msra.mxu0 0.0
    %1794 = vmatprep.subr.mxu0 0.0
    %1795 = vmatpush1.msra.mxu0 0.0
    %1796 = vmatprep.subr.mxu0 0.0
    %1797 = vmatpush1.msra.mxu0 0.0
    %1798 = vmatprep.subr.mxu0 0.0
    %1799 = vmatpush1.msra.mxu0 0.0
    %1800 = vmatprep.subr.mxu0 0.0
    %1801 = vmatpush1.msra.mxu0 0.0
    %1802 = vmatprep.subr.mxu0 0.0
    %1803 = vmatpush1.msra.mxu0 0.0
    %1804 = vmatprep.subr.mxu0 0.0
    %1805 = vmatpush1.msra.mxu0 0.0
    %1806 = vmatprep.subr.mxu0 0.0
    %1807 = vmatpush1.msra.mxu0 0.0
    %1808 = vmatprep.subr.mxu0 0.0
    %1809 = vmatpush1.msra.mxu0 0.0
    %1810 = vmatprep.subr.mxu0 0.0
    %1811 = vmatpush1.msra.mxu0 0.0
    %1812 = vmatprep.mubr.f32.mxu0 0.0
    %v1813 = vand.u32 %v1177, 4294901760
    %1814 = vmatmul.mubr.f32.gmra.mrb[0].mxu0 %v1813
    %v1815 = vpop.f32.mrb[0].mxu0
    %v1816 = vadd.f32 %v1729, %v1815
    %v1817 = vpop.f32.mrb[0].mxu0
    %1818 = vdwg.mxu0
    %v1819 = vmul.f32 %v1816, 0.032258064
    %v1820 = vrsqrt.pop %v1819
    %v1821 = vmul.f32 %v1819, %v1820
    %vm1822 = vcmp.eq.f32.partialorder %v1819, inf
    %v1823 = vsel %vm1822, %v1819, %v1821
    %vm1824 = vcmp.eq.f32.partialorder %v1819, 0.0
    %v1825 = vand.u32 %v1819, 2147483648
    %v1826 = vsel %vm1824, %v1825, %v1823
    %v1827 = vadd.f32 %v1826, 1e-06
    %v1828 = vrcp.pop %v1827
    %v1829 = vstv %s78
    %v1830 = vmul.f32 %v1829, %v1828
    %v1832 = vsel %vm722, %v1830, 0
    %1834 = vmatprep.subr.mxu0 0.0
    %v1835 = vand.u32 %v728, 4294901760
    %1836 = vmatpush1.msra.mxu0 %v1835
    %1837 = vmatprep.subr.mxu0 0.0
    %1838 = vmatpush1.msra.mxu0 0.0
    %1839 = vmatprep.subr.mxu0 0.0
    %1840 = vmatpush1.msra.mxu0 0.0
    %1841 = vmatprep.subr.mxu0 0.0
    %1842 = vmatpush1.msra.mxu0 0.0
    %1843 = vmatprep.subr.mxu0 0.0
    %1844 = vmatpush1.msra.mxu0 0.0
    %1845 = vmatprep.subr.mxu0 0.0
    %1846 = vmatpush1.msra.mxu0 0.0
    %1847 = vmatprep.subr.mxu0 0.0
    %1848 = vmatpush1.msra.mxu0 0.0
    %1849 = vmatprep.subr.mxu0 0.0
    %1850 = vmatpush1.msra.mxu0 0.0
    %1851 = vmatprep.subr.mxu0 0.0
    %1852 = vmatpush1.msra.mxu0 0.0
    %1853 = vmatprep.subr.mxu0 0.0
    %1854 = vmatpush1.msra.mxu0 0.0
    %1855 = vmatprep.subr.mxu0 0.0
    %1856 = vmatpush1.msra.mxu0 0.0
    %1857 = vmatprep.subr.mxu0 0.0
    %1858 = vmatpush1.msra.mxu0 0.0
    %1859 = vmatprep.subr.mxu0 0.0
    %1860 = vmatpush1.msra.mxu0 0.0
    %1861 = vmatprep.subr.mxu0 0.0
    %1862 = vmatpush1.msra.mxu0 0.0
    %1863 = vmatprep.subr.mxu0 0.0
    %1864 = vmatpush1.msra.mxu0 0.0
    %1865 = vmatprep.subr.mxu0 0.0
    %1866 = vmatpush1.msra.mxu0 0.0
    %1867 = vmatprep.subr.mxu0 0.0
    %1868 = vmatpush1.msra.mxu0 0.0
    %1869 = vmatprep.subr.mxu0 0.0
    %1870 = vmatpush1.msra.mxu0 0.0
    %1871 = vmatprep.subr.mxu0 0.0
    %1872 = vmatpush1.msra.mxu0 0.0
    %1873 = vmatprep.subr.mxu0 0.0
    %1874 = vmatpush1.msra.mxu0 0.0
    %1875 = vmatprep.subr.mxu0 0.0
    %1876 = vmatpush1.msra.mxu0 0.0
    %1877 = vmatprep.subr.mxu0 0.0
    %1878 = vmatpush1.msra.mxu0 0.0
    %1879 = vmatprep.subr.mxu0 0.0
    %1880 = vmatpush1.msra.mxu0 0.0
    %1881 = vmatprep.subr.mxu0 0.0
    %1882 = vmatpush1.msra.mxu0 0.0
    %1883 = vmatprep.subr.mxu0 0.0
    %1884 = vmatpush1.msra.mxu0 0.0
    %1885 = vmatprep.subr.mxu0 0.0
    %1886 = vmatpush1.msra.mxu0 0.0
    %1887 = vmatprep.subr.mxu0 0.0
    %1888 = vmatpush1.msra.mxu0 0.0
    %1889 = vmatprep.subr.mxu0 0.0
    %1890 = vmatpush1.msra.mxu0 0.0
    %1891 = vmatprep.subr.mxu0 0.0
    %1892 = vmatpush1.msra.mxu0 0.0
    %1893 = vmatprep.subr.mxu0 0.0
    %1894 = vmatpush1.msra.mxu0 0.0
    %1895 = vmatprep.subr.mxu0 0.0
    %1896 = vmatpush1.msra.mxu0 0.0
    %1897 = vmatprep.subr.mxu0 0.0
    %1898 = vmatpush1.msra.mxu0 0.0
    %1899 = vmatprep.mubr.f32.mxu0 0.0
    %v1900 = vand.u32 %v1832, 4294901760
    %v1901 = vsub.f32 %v1832, %v1900
    %v1902 = vand.u32 %v1901, 4294901760
    %v1903 = vsub.f32 %v1901, %v1902
    %v1904 = vand.u32 %v1903, 4294901760
    %1905 = vmatmul.mubr.f32.gmra.mrb[0].mxu0 %v1904
    %v1906 = vpop.f32.mrb[0].mxu0
    %v1907 = vadd.f32 0.0, %v1906
    %v1908 = vpop.f32.mrb[0].mxu0
    %1909 = vdwg.mxu0
    %1910 = vmatprep.subr.mxu0 0.0
    %v1911 = vand.u32 %v728, 4294901760
    %v1912 = vsub.f32 %v728, %v1911
    %v1913 = vand.u32 %v1912, 4294901760
    %v1914 = vsub.f32 %v1912, %v1913
    %v1915 = vand.u32 %v1914, 4294901760
    %1916 = vmatpush1.msra.mxu0 %v1915
    %1917 = vmatprep.subr.mxu0 0.0
    %1918 = vmatpush1.msra.mxu0 0.0
    %1919 = vmatprep.subr.mxu0 0.0
    %1920 = vmatpush1.msra.mxu0 0.0
    %1921 = vmatprep.subr.mxu0 0.0
    %1922 = vmatpush1.msra.mxu0 0.0
    %1923 = vmatprep.subr.mxu0 0.0
    %1924 = vmatpush1.msra.mxu0 0.0
    %1925 = vmatprep.subr.mxu0 0.0
    %1926 = vmatpush1.msra.mxu0 0.0
    %1927 = vmatprep.subr.mxu0 0.0
    %1928 = vmatpush1.msra.mxu0 0.0
    %1929 = vmatprep.subr.mxu0 0.0
    %1930 = vmatpush1.msra.mxu0 0.0
    %1931 = vmatprep.subr.mxu0 0.0
    %1932 = vmatpush1.msra.mxu0 0.0
    %1933 = vmatprep.subr.mxu0 0.0
    %1934 = vmatpush1.msra.mxu0 0.0
    %1935 = vmatprep.subr.mxu0 0.0
    %1936 = vmatpush1.msra.mxu0 0.0
    %1937 = vmatprep.subr.mxu0 0.0
    %1938 = vmatpush1.msra.mxu0 0.0
    %1939 = vmatprep.subr.mxu0 0.0
    %1940 = vmatpush1.msra.mxu0 0.0
    %1941 = vmatprep.subr.mxu0 0.0
    %1942 = vmatpush1.msra.mxu0 0.0
    %1943 = vmatprep.subr.mxu0 0.0
    %1944 = vmatpush1.msra.mxu0 0.0
    %1945 = vmatprep.subr.mxu0 0.0
    %1946 = vmatpush1.msra.mxu0 0.0
    %1947 = vmatprep.subr.mxu0 0.0
    %1948 = vmatpush1.msra.mxu0 0.0
    %1949 = vmatprep.subr.mxu0 0.0
    %1950 = vmatpush1.msra.mxu0 0.0
    %1951 = vmatprep.subr.mxu0 0.0
    %1952 = vmatpush1.msra.mxu0 0.0
    %1953 = vmatprep.subr.mxu0 0.0
    %1954 = vmatpush1.msra.mxu0 0.0
    %1955 = vmatprep.subr.mxu0 0.0
    %1956 = vmatpush1.msra.mxu0 0.0
    %1957 = vmatprep.subr.mxu0 0.0
    %1958 = vmatpush1.msra.mxu0 0.0
    %1959 = vmatprep.subr.mxu0 0.0
    %1960 = vmatpush1.msra.mxu0 0.0
    %1961 = vmatprep.subr.mxu0 0.0
    %1962 = vmatpush1.msra.mxu0 0.0
    %1963 = vmatprep.subr.mxu0 0.0
    %1964 = vmatpush1.msra.mxu0 0.0
    %1965 = vmatprep.subr.mxu0 0.0
    %1966 = vmatpush1.msra.mxu0 0.0
    %1967 = vmatprep.subr.mxu0 0.0
    %1968 = vmatpush1.msra.mxu0 0.0
    %1969 = vmatprep.subr.mxu0 0.0
    %1970 = vmatpush1.msra.mxu0 0.0
    %1971 = vmatprep.subr.mxu0 0.0
    %1972 = vmatpush1.msra.mxu0 0.0
    %1973 = vmatprep.subr.mxu0 0.0
    %1974 = vmatpush1.msra.mxu0 0.0
    %1975 = vmatprep.subr.mxu0 0.0
    %1976 = vmatpush1.msra.mxu0 0.0
    %1977 = vmatprep.subr.mxu0 0.0
    %1978 = vmatpush1.msra.mxu0 0.0
    %1979 = vmatprep.mubr.f32.mxu0 0.0
    %v1980 = vand.u32 %v1832, 4294901760
    %1981 = vmatmul.mubr.f32.gmra.mrb[0].mxu0 %v1980
    %v1982 = vpop.f32.mrb[0].mxu0
    %v1983 = vadd.f32 %v1907, %v1982
    %v1984 = vpop.f32.mrb[0].mxu0
    %1985 = vdwg.mxu0
    %1986 = vmatprep.subr.mxu0 0.0
    %v1987 = vand.u32 %v728, 4294901760
    %v1988 = vsub.f32 %v728, %v1987
    %1989 = vmatpush1.msra.mxu0 %v1988
    %1990 = vmatprep.subr.mxu0 0.0
    %1991 = vmatpush1.msra.mxu0 0.0
    %1992 = vmatprep.subr.mxu0 0.0
    %1993 = vmatpush1.msra.mxu0 0.0
    %1994 = vmatprep.subr.mxu0 0.0
    %1995 = vmatpush1.msra.mxu0 0.0
    %1996 = vmatprep.subr.mxu0 0.0
    %1997 = vmatpush1.msra.mxu0 0.0
    %1998 = vmatprep.subr.mxu0 0.0
    %1999 = vmatpush1.msra.mxu0 0.0
    %2000 = vmatprep.subr.mxu0 0.0
    %2001 = vmatpush1.msra.mxu0 0.0
    %2002 = vmatprep.subr.mxu0 0.0
    %2003 = vmatpush1.msra.mxu0 0.0
    %2004 = vmatprep.subr.mxu0 0.0
    %2005 = vmatpush1.msra.mxu0 0.0
    %2006 = vmatprep.subr.mxu0 0.0
    %2007 = vmatpush1.msra.mxu0 0.0
    %2008 = vmatprep.subr.mxu0 0.0
    %2009 = vmatpush1.msra.mxu0 0.0
    %2010 = vmatprep.subr.mxu0 0.0
    %2011 = vmatpush1.msra.mxu0 0.0
    %2012 = vmatprep.subr.mxu0 0.0
    %2013 = vmatpush1.msra.mxu0 0.0
    %2014 = vmatprep.subr.mxu0 0.0
    %2015 = vmatpush1.msra.mxu0 0.0
    %2016 = vmatprep.subr.mxu0 0.0
    %2017 = vmatpush1.msra.mxu0 0.0
    %2018 = vmatprep.subr.mxu0 0.0
    %2019 = vmatpush1.msra.mxu0 0.0
    %2020 = vmatprep.subr.mxu0 0.0
    %2021 = vmatpush1.msra.mxu0 0.0
    %2022 = vmatprep.subr.mxu0 0.0
    %2023 = vmatpush1.msra.mxu0 0.0
    %2024 = vmatprep.subr.mxu0 0.0
    %2025 = vmatpush1.msra.mxu0 0.0
    %2026 = vmatprep.subr.mxu0 0.0
    %2027 = vmatpush1.msra.mxu0 0.0
    %2028 = vmatprep.subr.mxu0 0.0
    %2029 = vmatpush1.msra.mxu0 0.0
    %2030 = vmatprep.subr.mxu0 0.0
    %2031 = vmatpush1.msra.mxu0 0.0
    %2032 = vmatprep.subr.mxu0 0.0
    %2033 = vmatpush1.msra.mxu0 0.0
    %2034 = vmatprep.subr.mxu0 0.0
    %2035 = vmatpush1.msra.mxu0 0.0
    %2036 = vmatprep.subr.mxu0 0.0
    %2037 = vmatpush1.msra.mxu0 0.0
    %2038 = vmatprep.subr.mxu0 0.0
    %2039 = vmatpush1.msra.mxu0 0.0
    %2040 = vmatprep.subr.mxu0 0.0
    %2041 = vmatpush1.msra.mxu0 0.0
    %2042 = vmatprep.subr.mxu0 0.0
    %2043 = vmatpush1.msra.mxu0 0.0
    %2044 = vmatprep.subr.mxu0 0.0
    %2045 = vmatpush1.msra.mxu0 0.0
    %2046 = vmatprep.subr.mxu0 0.0
    %2047 = vmatpush1.msra.mxu0 0.0
    %2048 = vmatprep.subr.mxu0 0.0
    %2049 = vmatpush1.msra.mxu0 0.0
    %2050 = vmatprep.subr.mxu0 0.0
    %2051 = vmatpush1.msra.mxu0 0.0
    %2052 = vmatprep.mubr.f32.mxu0 0.0
    %v2053 = vand.u32 %v1832, 4294901760
    %v2054 = vsub.f32 %v1832, %v2053
    %2055 = vmatmul.mubr.f32.gmra.mrb[0].mxu0 %v2054
    %v2056 = vpop.f32.mrb[0].mxu0
    %v2057 = vadd.f32 %v1983, %v2056
    %v2058 = vpop.f32.mrb[0].mxu0
    %2059 = vdwg.mxu0
    %2060 = vmatprep.subr.mxu0 0.0
    %v2061 = vand.u32 %v728, 4294901760
    %2062 = vmatpush1.msra.mxu0 %v2061
    %2063 = vmatprep.subr.mxu0 0.0
    %2064 = vmatpush1.msra.mxu0 0.0
    %2065 = vmatprep.subr.mxu0 0.0
    %2066 = vmatpush1.msra.mxu0 0.0
    %2067 = vmatprep.subr.mxu0 0.0
    %2068 = vmatpush1.msra.mxu0 0.0
    %2069 = vmatprep.subr.mxu0 0.0
    %2070 = vmatpush1.msra.mxu0 0.0
    %2071 = vmatprep.subr.mxu0 0.0
    %2072 = vmatpush1.msra.mxu0 0.0
    %2073 = vmatprep.subr.mxu0 0.0
    %2074 = vmatpush1.msra.mxu0 0.0
    %2075 = vmatprep.subr.mxu0 0.0
    %2076 = vmatpush1.msra.mxu0 0.0
    %2077 = vmatprep.subr.mxu0 0.0
    %2078 = vmatpush1.msra.mxu0 0.0
    %2079 = vmatprep.subr.mxu0 0.0
    %2080 = vmatpush1.msra.mxu0 0.0
    %2081 = vmatprep.subr.mxu0 0.0
    %2082 = vmatpush1.msra.mxu0 0.0
    %2083 = vmatprep.subr.mxu0 0.0
    %2084 = vmatpush1.msra.mxu0 0.0
    %2085 = vmatprep.subr.mxu0 0.0
    %2086 = vmatpush1.msra.mxu0 0.0
    %2087 = vmatprep.subr.mxu0 0.0
    %2088 = vmatpush1.msra.mxu0 0.0
    %2089 = vmatprep.subr.mxu0 0.0
    %2090 = vmatpush1.msra.mxu0 0.0
    %2091 = vmatprep.subr.mxu0 0.0
    %2092 = vmatpush1.msra.mxu0 0.0
    %2093 = vmatprep.subr.mxu0 0.0
    %2094 = vmatpush1.msra.mxu0 0.0
    %2095 = vmatprep.subr.mxu0 0.0
    %2096 = vmatpush1.msra.mxu0 0.0
    %2097 = vmatprep.subr.mxu0 0.0
    %2098 = vmatpush1.msra.mxu0 0.0
    %2099 = vmatprep.subr.mxu0 0.0
    %2100 = vmatpush1.msra.mxu0 0.0
    %2101 = vmatprep.subr.mxu0 0.0
    %2102 = vmatpush1.msra.mxu0 0.0
    %2103 = vmatprep.subr.mxu0 0.0
    %2104 = vmatpush1.msra.mxu0 0.0
    %2105 = vmatprep.subr.mxu0 0.0
    %2106 = vmatpush1.msra.mxu0 0.0
    %2107 = vmatprep.subr.mxu0 0.0
    %2108 = vmatpush1.msra.mxu0 0.0
    %2109 = vmatprep.subr.mxu0 0.0
    %2110 = vmatpush1.msra.mxu0 0.0
    %2111 = vmatprep.subr.mxu0 0.0
    %2112 = vmatpush1.msra.mxu0 0.0
    %2113 = vmatprep.subr.mxu0 0.0
    %2114 = vmatpush1.msra.mxu0 0.0
    %2115 = vmatprep.subr.mxu0 0.0
    %2116 = vmatpush1.msra.mxu0 0.0
    %2117 = vmatprep.subr.mxu0 0.0
    %2118 = vmatpush1.msra.mxu0 0.0
    %2119 = vmatprep.subr.mxu0 0.0
    %2120 = vmatpush1.msra.mxu0 0.0
    %2121 = vmatprep.subr.mxu0 0.0
    %2122 = vmatpush1.msra.mxu0 0.0
    %2123 = vmatprep.subr.mxu0 0.0
    %2124 = vmatpush1.msra.mxu0 0.0
    %2125 = vmatprep.mubr.f32.mxu0 0.0
    %v2126 = vand.u32 %v1832, 4294901760
    %v2127 = vsub.f32 %v1832, %v2126
    %v2128 = vand.u32 %v2127, 4294901760
    %2129 = vmatmul.mubr.f32.gmra.mrb[0].mxu0 %v2128
    %v2130 = vpop.f32.mrb[0].mxu0
    %v2131 = vadd.f32 %v2057, %v2130
    %v2132 = vpop.f32.mrb[0].mxu0
    %2133 = vdwg.mxu0
    %2134 = vmatprep.subr.mxu0 0.0
    %v2135 = vand.u32 %v728, 4294901760
    %v2136 = vsub.f32 %v728, %v2135
    %v2137 = vand.u32 %v2136, 4294901760
    %2138 = vmatpush1.msra.mxu0 %v2137
    %2139 = vmatprep.subr.mxu0 0.0
    %2140 = vmatpush1.msra.mxu0 0.0
    %2141 = vmatprep.subr.mxu0 0.0
    %2142 = vmatpush1.msra.mxu0 0.0
    %2143 = vmatprep.subr.mxu0 0.0
    %2144 = vmatpush1.msra.mxu0 0.0
    %2145 = vmatprep.subr.mxu0 0.0
    %2146 = vmatpush1.msra.mxu0 0.0
    %2147 = vmatprep.subr.mxu0 0.0
    %2148 = vmatpush1.msra.mxu0 0.0
    %2149 = vmatprep.subr.mxu0 0.0
    %2150 = vmatpush1.msra.mxu0 0.0
    %2151 = vmatprep.subr.mxu0 0.0
    %2152 = vmatpush1.msra.mxu0 0.0
    %2153 = vmatprep.subr.mxu0 0.0
    %2154 = vmatpush1.msra.mxu0 0.0
    %2155 = vmatprep.subr.mxu0 0.0
    %2156 = vmatpush1.msra.mxu0 0.0
    %2157 = vmatprep.subr.mxu0 0.0
    %2158 = vmatpush1.msra.mxu0 0.0
    %2159 = vmatprep.subr.mxu0 0.0
    %2160 = vmatpush1.msra.mxu0 0.0
    %2161 = vmatprep.subr.mxu0 0.0
    %2162 = vmatpush1.msra.mxu0 0.0
    %2163 = vmatprep.subr.mxu0 0.0
    %2164 = vmatpush1.msra.mxu0 0.0
    %2165 = vmatprep.subr.mxu0 0.0
    %2166 = vmatpush1.msra.mxu0 0.0
    %2167 = vmatprep.subr.mxu0 0.0
    %2168 = vmatpush1.msra.mxu0 0.0
    %2169 = vmatprep.subr.mxu0 0.0
    %2170 = vmatpush1.msra.mxu0 0.0
    %2171 = vmatprep.subr.mxu0 0.0
    %2172 = vmatpush1.msra.mxu0 0.0
    %2173 = vmatprep.subr.mxu0 0.0
    %2174 = vmatpush1.msra.mxu0 0.0
    %2175 = vmatprep.subr.mxu0 0.0
    %2176 = vmatpush1.msra.mxu0 0.0
    %2177 = vmatprep.subr.mxu0 0.0
    %2178 = vmatpush1.msra.mxu0 0.0
    %2179 = vmatprep.subr.mxu0 0.0
    %2180 = vmatpush1.msra.mxu0 0.0
    %2181 = vmatprep.subr.mxu0 0.0
    %2182 = vmatpush1.msra.mxu0 0.0
    %2183 = vmatprep.subr.mxu0 0.0
    %2184 = vmatpush1.msra.mxu0 0.0
    %2185 = vmatprep.subr.mxu0 0.0
    %2186 = vmatpush1.msra.mxu0 0.0
    %2187 = vmatprep.subr.mxu0 0.0
    %2188 = vmatpush1.msra.mxu0 0.0
    %2189 = vmatprep.subr.mxu0 0.0
    %2190 = vmatpush1.msra.mxu0 0.0
    %2191 = vmatprep.subr.mxu0 0.0
    %2192 = vmatpush1.msra.mxu0 0.0
    %2193 = vmatprep.subr.mxu0 0.0
    %2194 = vmatpush1.msra.mxu0 0.0
    %2195 = vmatprep.subr.mxu0 0.0
    %2196 = vmatpush1.msra.mxu0 0.0
    %2197 = vmatprep.subr.mxu0 0.0
    %2198 = vmatpush1.msra.mxu0 0.0
    %2199 = vmatprep.subr.mxu0 0.0
    %2200 = vmatpush1.msra.mxu0 0.0
    %2201 = vmatprep.mubr.f32.mxu0 0.0
    %v2202 = vand.u32 %v1832, 4294901760
    %2203 = vmatmul.mubr.f32.gmra.mrb[0].mxu0 %v2202
    %v2204 = vpop.f32.mrb[0].mxu0
    %v2205 = vadd.f32 %v2131, %v2204
    %v2206 = vpop.f32.mrb[0].mxu0
    %2207 = vdwg.mxu0
    %2208 = vmatprep.subr.mxu0 0.0
    %v2209 = vand.u32 %v728, 4294901760
    %2210 = vmatpush1.msra.mxu0 %v2209
    %2211 = vmatprep.subr.mxu0 0.0
    %2212 = vmatpush1.msra.mxu0 0.0
    %2213 = vmatprep.subr.mxu0 0.0
    %2214 = vmatpush1.msra.mxu0 0.0
    %2215 = vmatprep.subr.mxu0 0.0
    %2216 = vmatpush1.msra.mxu0 0.0
    %2217 = vmatprep.subr.mxu0 0.0
    %2218 = vmatpush1.msra.mxu0 0.0
    %2219 = vmatprep.subr.mxu0 0.0
    %2220 = vmatpush1.msra.mxu0 0.0
    %2221 = vmatprep.subr.mxu0 0.0
    %2222 = vmatpush1.msra.mxu0 0.0
    %2223 = vmatprep.subr.mxu0 0.0
    %2224 = vmatpush1.msra.mxu0 0.0
    %2225 = vmatprep.subr.mxu0 0.0
    %2226 = vmatpush1.msra.mxu0 0.0
    %2227 = vmatprep.subr.mxu0 0.0
    %2228 = vmatpush1.msra.mxu0 0.0
    %2229 = vmatprep.subr.mxu0 0.0
    %2230 = vmatpush1.msra.mxu0 0.0
    %2231 = vmatprep.subr.mxu0 0.0
    %2232 = vmatpush1.msra.mxu0 0.0
    %2233 = vmatprep.subr.mxu0 0.0
    %2234 = vmatpush1.msra.mxu0 0.0
    %2235 = vmatprep.subr.mxu0 0.0
    %2236 = vmatpush1.msra.mxu0 0.0
    %2237 = vmatprep.subr.mxu0 0.0
    %2238 = vmatpush1.msra.mxu0 0.0
    %2239 = vmatprep.subr.mxu0 0.0
    %2240 = vmatpush1.msra.mxu0 0.0
    %2241 = vmatprep.subr.mxu0 0.0
    %2242 = vmatpush1.msra.mxu0 0.0
    %2243 = vmatprep.subr.mxu0 0.0
    %2244 = vmatpush1.msra.mxu0 0.0
    %2245 = vmatprep.subr.mxu0 0.0
    %2246 = vmatpush1.msra.mxu0 0.0
    %2247 = vmatprep.subr.mxu0 0.0
    %2248 = vmatpush1.msra.mxu0 0.0
    %2249 = vmatprep.subr.mxu0 0.0
    %2250 = vmatpush1.msra.mxu0 0.0
    %2251 = vmatprep.subr.mxu0 0.0
    %2252 = vmatpush1.msra.mxu0 0.0
    %2253 = vmatprep.subr.mxu0 0.0
    %2254 = vmatpush1.msra.mxu0 0.0
    %2255 = vmatprep.subr.mxu0 0.0
    %2256 = vmatpush1.msra.mxu0 0.0
    %2257 = vmatprep.subr.mxu0 0.0
    %2258 = vmatpush1.msra.mxu0 0.0
    %2259 = vmatprep.subr.mxu0 0.0
    %2260 = vmatpush1.msra.mxu0 0.0
    %2261 = vmatprep.subr.mxu0 0.0
    %2262 = vmatpush1.msra.mxu0 0.0
    %2263 = vmatprep.subr.mxu0 0.0
    %2264 = vmatpush1.msra.mxu0 0.0
    %2265 = vmatprep.subr.mxu0 0.0
    %2266 = vmatpush1.msra.mxu0 0.0
    %2267 = vmatprep.subr.mxu0 0.0
    %2268 = vmatpush1.msra.mxu0 0.0
    %2269 = vmatprep.subr.mxu0 0.0
    %2270 = vmatpush1.msra.mxu0 0.0
    %2271 = vmatprep.subr.mxu0 0.0
    %2272 = vmatpush1.msra.mxu0 0.0
    %2273 = vmatprep.mubr.f32.mxu0 0.0
    %v2274 = vand.u32 %v1832, 4294901760
    %2275 = vmatmul.mubr.f32.gmra.mrb[0].mxu0 %v2274
    %v2276 = vpop.f32.mrb[0].mxu0
    %v2277 = vadd.f32 %v2205, %v2276
    %v2278 = vpop.f32.mrb[0].mxu0
    %2279 = vdwg.mxu0
    %v2280 = vmul.f32 %v1176, %v2277
    %v2281 = vstv %s79
    %v2282 = vadd.f32 %v2280, %v2281
    %2283 = vst [vmem:[#allocation10] sm:$0xf] %v2282
    // Predicated region
    $region34: #{tpu_custom_call.1} parent=1 // pred_check
      _
    $region35: #{tpu_custom_call.1} parent=1 // pred_check_branch
      %2285 = sbr.rel (0) target = $region37
    $region36: #{tpu_custom_call.1} parent=1 // pred_region
      %s2287 = ssub.s32 64, 64
      %2288 = vsyncadd [#allocation6], %s2287
      %s2290 = sshll.u32 [#allocation10], 4
      %s2291 = int_to_ptr.vmem [resolvable:$true] %s2290
      %2293 = dma.vmem_to_hbm [thread:$0]  %s2291, 64, %s5, [#allocation6]
    $region37: #{tpu_custom_call.1} parent=1 // pred_fallthru
      _
    // Predicated region
    $region38: #{tpu_custom_call.1} parent=1 // pred_check
      _
    $region39: #{tpu_custom_call.1} parent=1 // pred_check_branch
      %2295 = sbr.rel (0) target = $region41
    $region40: #{tpu_custom_call.1} parent=1 // pred_region
      %2296 = dma.done [#allocation6], 64
    $region41: #{tpu_custom_call.1} parent=1 // pred_fallthru
      _
    %2297 = vsyncpa [#allocation5], 1
    %2298 = vsyncpa [#allocation8], 1
    %2299 = vsyncpa [#allocation6], 1

</llo_original>
